<compile_context>
chip_gen: v7x
topology: tpu7x:2x2x1
jax: 0.10.0
libtpu: 0.0.40
codegen_flags: <defaults>
</compile_context>

<pallas_src>
import jax
import jax.numpy as jnp
from jax import lax
from jax.experimental import pallas as pl
from jax.experimental.pallas import tpu as pltpu

EPS = 1e-5


def _conv_stats_kernel(p00, p01, p10, p11, w_ref, y_ref, stat_ref):
    """Stride-2 3x3 depthwise conv + per-(sample, channel-block) sum / sumsq.

    pXY:      (Hh, Wh, TC)  phase views: pXY[i, j, c] = x_pad[2i+X, 2j+Y, c]
    w_ref:    (9,  TC)      depthwise weights, row kh*3+kw, channels on lanes
    y_ref:    (Ho, Wo, TC)  conv output tile
    stat_ref: (2,  TC)      [sum, sum_of_squares] over this tile
    """
    Ho, Wo, TC = y_ref.shape
    phases = ((p00, p01), (p10, p11))

    acc = jnp.zeros((Ho, Wo, TC), jnp.float32)
    for kh in range(3):
        for kw in range(3):
            ph = phases[kh % 2][kw % 2]
            dh, dw = kh // 2, kw // 2
            # contiguous static slice: x_pad[2i+kh, 2j+kw, c]
            tap = ph[dh:dh + Ho, dw:dw + Wo, :].astype(jnp.float32)
            wv = w_ref[kh * 3 + kw:kh * 3 + kw + 1, :].astype(jnp.float32)  # (1, TC)
            acc = acc + wv * tap

    y_ref[...] = acc.astype(y_ref.dtype)

    s1 = jnp.sum(jnp.sum(acc, axis=0), axis=0, keepdims=True)          # (1, TC)
    s2 = jnp.sum(jnp.sum(acc * acc, axis=0), axis=0, keepdims=True)    # (1, TC)
    stat_ref[0:1, :] = s1
    stat_ref[1:2, :] = s2


def _bn_apply_kernel(y_ref, scale_ref, shift_ref, o_ref):
    """o = y * scale + shift  (per-channel, channels on lanes)."""
    y = y_ref[...].astype(jnp.float32)
    o_ref[...] = (y * scale_ref[...] + shift_ref[...]).astype(o_ref.dtype)


def _pick_channel_tile(C):
    for tc in (256, 128):
        if C % tc == 0:
            return tc
    return C  # small / odd channel counts: take the full dim on lanes


def downblock(x, w, gamma, beta):
    """x: (N,C,H,W) f32; w: (C,3,3) depthwise weights; gamma,beta: (C,).

    Returns (N, C, H//2, W//2) f32 (training-mode BatchNorm forward).
    """
    N, C, H, W = x.shape
    assert H % 2 == 0 and W % 2 == 0, "even spatial dims expected"
    Ho, Wo = H // 2, W // 2
    Hh, Wh = Ho + 1, Wo + 1          # padded half-sizes

    TC = _pick_channel_tile(C)
    NCB = C // TC
    grid = (N, NCB)

    # ---- layout plumbing (one XLA copy): NCHW -> padded NHWC with the W-phase
    # split folded into the same transpose, then free reshapes expose H-phases.
    # xphw[n, i, ph, pw, j, c] = x_pad[n, 2i+ph, 2j+pw, c]
    x_nhwc = jnp.transpose(x, (0, 2, 3, 1)).astype(jnp.float32)
    xp = jnp.pad(x_nhwc, ((0, 0), (1, 1), (1, 1), (0, 0)))       # (N, H+2, W+2, C)
    xphw = xp.reshape(N, H + 2, Wh, 2, C).transpose(0, 1, 3, 2, 4)
    xphw = xphw.reshape(N, Hh, 2, 2, Wh, C)

    w9 = w.reshape(C, 9).T.astype(jnp.float32)                   # (9, C)

    def phase_spec(ph, pw):
        return pl.BlockSpec(
            (None, Hh, None, None, Wh, TC),
            lambda n, cb, _ph=ph, _pw=pw: (n, 0, _ph, _pw, 0, cb))

    y_block = pl.BlockSpec((None, Ho, Wo, TC), lambda n, cb: (n, 0, 0, cb))

    # ---------------- pass 1: depthwise conv + per-tile statistics ----------
    y_conv, stats = pl.pallas_call(
        _conv_stats_kernel,
        grid=grid,
        in_specs=[
            phase_spec(0, 0), phase_spec(0, 1),
            phase_spec(1, 0), phase_spec(1, 1),
            pl.BlockSpec((9, TC), lambda n, cb: (0, cb)),
        ],
        out_specs=[
            y_block,
            pl.BlockSpec((None, 2, TC), lambda n, cb: (n, 0, cb)),
        ],
        out_shape=[
            jax.ShapeDtypeStruct((N, Ho, Wo, C), jnp.float32),
            jax.ShapeDtypeStruct((N, 2, C), jnp.float32),
        ],
        compiler_params=pltpu.CompilerParams(
            dimension_semantics=("parallel", "parallel")),
    )(xphw, xphw, xphw, xphw, w9)

    # ---- finalize BatchNorm statistics (tiny per-channel math, plain JAX) --
    count = float(N * Ho * Wo)
    mean = jnp.sum(stats[:, 0, :], axis=0) / count
    var = jnp.maximum(jnp.sum(stats[:, 1, :], axis=0) / count - mean * mean, 0.0)
    scale = gamma.astype(jnp.float32) * lax.rsqrt(var + EPS)          # (C,)
    shift = beta.astype(jnp.float32) - mean * scale                   # (C,)
    scale2 = scale.reshape(1, C)
    shift2 = shift.reshape(1, C)
    # TODO(synk): nn.BatchNorm2d running_mean / running_var buffer updates are a
    # training-time side effect and are not part of the returned tensor.

    # ---------------- pass 2: apply normalization ---------------------------
    y_nhwc = pl.pallas_call(
        _bn_apply_kernel,
        grid=grid,
        in_specs=[
            y_block,
            pl.BlockSpec((1, TC), lambda n, cb: (0, cb)),
            pl.BlockSpec((1, TC), lambda n, cb: (0, cb)),
        ],
        out_specs=y_block,
        out_shape=jax.ShapeDtypeStruct((N, Ho, Wo, C), jnp.float32),
        compiler_params=pltpu.CompilerParams(
            dimension_semantics=("parallel", "parallel")),
    )(y_conv, scale2, shift2)

    return jnp.transpose(y_nhwc, (0, 3, 1, 2))                        # NCHW out


def downblock_reference(x, w, gamma, beta):
    """Pure-JAX reference matching PyTorch semantics (training-mode BN)."""
    N, C, H, W = x.shape
    y = lax.conv_general_dilated(
        x.astype(jnp.float32),
        w.reshape(C, 1, 3, 3).astype(jnp.float32),
        window_strides=(2, 2),
        padding=((1, 1), (1, 1)),
        dimension_numbers=("NCHW", "OIHW", "NCHW"),
        feature_group_count=C,
    )
    mean = y.mean(axis=(0, 2, 3), keepdims=True)
    var = ((y - mean) ** 2).mean(axis=(0, 2, 3), keepdims=True)
    return (y - mean) * lax.rsqrt(var + EPS) * gamma.reshape(1, C, 1, 1) \
        + beta.reshape(1, C, 1, 1)


if __name__ == "__main__":
    key = jax.random.PRNGKey(0)
    kx, kw, kg, kb = jax.random.split(key, 4)

    N, C, H, W = 2, 4, 16, 16
    x = jax.random.normal(kx, (N, C, H, W), dtype=jnp.float32)
    # Module parameter shapes: dwconv weight (C,1,3,3) -> (C,3,3); bn weight/bias (C,).
    w = 0.2 * jax.random.normal(kw, (C, 3, 3), dtype=jnp.float32)
    gamma = 1.0 + 0.1 * jax.random.normal(kg, (C,), dtype=jnp.float32)
    beta = 0.1 * jax.random.normal(kb, (C,), dtype=jnp.float32)

    run = jax.jit(downblock)
    out = run(x, w, gamma, beta)
    out = jax.block_until_ready(out)

    ref = downblock_reference(x, w, gamma, beta)
    assert out.shape == (N, C, H // 2, W // 2)
    assert jnp.allclose(out, ref, atol=1e-4, rtol=1e-4), "mismatch vs reference"
    print("KERNEL_OK")
</pallas_src>

<mosaic_0001>
module attributes {stable_mosaic.version = 11 : i64} {
  func.func @_conv_stats_kernel(%arg0: i32, %arg1: i32, %arg2: memref<1x9x1x1x9x4xf32, #tpu.memory_space<vmem>>, %arg3: memref<1x9x1x1x9x4xf32, #tpu.memory_space<vmem>>, %arg4: memref<1x9x1x1x9x4xf32, #tpu.memory_space<vmem>>, %arg5: memref<1x9x1x1x9x4xf32, #tpu.memory_space<vmem>>, %arg6: memref<9x4xf32, #tpu.memory_space<vmem>>, %arg7: memref<1x8x8x4xf32, #tpu.memory_space<vmem>>, %arg8: memref<1x2x4xf32, #tpu.memory_space<vmem>>) attributes {dimension_semantics = [#tpu.dimension_semantics<parallel>, #tpu.dimension_semantics<parallel>], iteration_bounds = array<i64: 2, 1>, scalar_prefetch = 0 : i64, scratch_operands = 0 : i64, tpu.core_type = #tpu.core_type<tc>, window_params = [{transform_indices = @transform_0, window_bounds = array<i64: 1, 9, 1, 1, 9, 4>}, {transform_indices = @transform_1, window_bounds = array<i64: 1, 9, 1, 1, 9, 4>}, {transform_indices = @transform_2, window_bounds = array<i64: 1, 9, 1, 1, 9, 4>}, {transform_indices = @transform_3, window_bounds = array<i64: 1, 9, 1, 1, 9, 4>}, {transform_indices = @transform_4, window_bounds = array<i64: 9, 4>}, {transform_indices = @transform_5, window_bounds = array<i64: 1, 8, 8, 4>}, {transform_indices = @transform_6, window_bounds = array<i64: 1, 2, 4>}]} {
    %cst = arith.constant 0.000000e+00 : f32
    %0 = vector.broadcast %cst : f32 to vector<8x8x4xf32>
    %c0 = arith.constant 0 : index
    %c0_0 = arith.constant 0 : index
    %c0_1 = arith.constant 0 : index
    %c0_2 = arith.constant 0 : index
    %c0_3 = arith.constant 0 : index
    %c0_4 = arith.constant 0 : index
    %1 = vector.load %arg2[%c0, %c0_0, %c0_1, %c0_2, %c0_3, %c0_4] : memref<1x9x1x1x9x4xf32, #tpu.memory_space<vmem>>, vector<1x8x1x1x8x4xf32>
    %2 = vector.shape_cast %1 : vector<1x8x1x1x8x4xf32> to vector<8x8x4xf32>
    %c0_5 = arith.constant 0 : index
    %c0_6 = arith.constant 0 : index
    %3 = vector.load %arg6[%c0_5, %c0_6] : memref<9x4xf32, #tpu.memory_space<vmem>>, vector<1x4xf32>
    %4 = vector.shape_cast %3 : vector<1x4xf32> to vector<1x1x4xf32>
    %5 = vector.broadcast %4 : vector<1x1x4xf32> to vector<8x8x4xf32>
    %6 = arith.mulf %5, %2 : vector<8x8x4xf32>
    %7 = arith.addf %0, %6 : vector<8x8x4xf32>
    %c0_7 = arith.constant 0 : index
    %c0_8 = arith.constant 0 : index
    %c0_9 = arith.constant 0 : index
    %c0_10 = arith.constant 0 : index
    %c0_11 = arith.constant 0 : index
    %c0_12 = arith.constant 0 : index
    %8 = vector.load %arg3[%c0_7, %c0_8, %c0_9, %c0_10, %c0_11, %c0_12] : memref<1x9x1x1x9x4xf32, #tpu.memory_space<vmem>>, vector<1x8x1x1x8x4xf32>
    %9 = vector.shape_cast %8 : vector<1x8x1x1x8x4xf32> to vector<8x8x4xf32>
    %c1 = arith.constant 1 : index
    %c0_13 = arith.constant 0 : index
    %10 = vector.load %arg6[%c1, %c0_13] : memref<9x4xf32, #tpu.memory_space<vmem>>, vector<1x4xf32>
    %11 = vector.shape_cast %10 : vector<1x4xf32> to vector<1x1x4xf32>
    %12 = vector.broadcast %11 : vector<1x1x4xf32> to vector<8x8x4xf32>
    %13 = arith.mulf %12, %9 : vector<8x8x4xf32>
    %14 = arith.addf %7, %13 : vector<8x8x4xf32>
    %c0_14 = arith.constant 0 : index
    %c0_15 = arith.constant 0 : index
    %c0_16 = arith.constant 0 : index
    %c0_17 = arith.constant 0 : index
    %c1_18 = arith.constant 1 : index
    %c0_19 = arith.constant 0 : index
    %15 = vector.load %arg2[%c0_14, %c0_15, %c0_16, %c0_17, %c1_18, %c0_19] : memref<1x9x1x1x9x4xf32, #tpu.memory_space<vmem>>, vector<1x8x1x1x8x4xf32>
    %16 = vector.shape_cast %15 : vector<1x8x1x1x8x4xf32> to vector<8x8x4xf32>
    %c2 = arith.constant 2 : index
    %c0_20 = arith.constant 0 : index
    %17 = vector.load %arg6[%c2, %c0_20] : memref<9x4xf32, #tpu.memory_space<vmem>>, vector<1x4xf32>
    %18 = vector.shape_cast %17 : vector<1x4xf32> to vector<1x1x4xf32>
    %19 = vector.broadcast %18 : vector<1x1x4xf32> to vector<8x8x4xf32>
    %20 = arith.mulf %19, %16 : vector<8x8x4xf32>
    %21 = arith.addf %14, %20 : vector<8x8x4xf32>
    %c0_21 = arith.constant 0 : index
    %c0_22 = arith.constant 0 : index
    %c0_23 = arith.constant 0 : index
    %c0_24 = arith.constant 0 : index
    %c0_25 = arith.constant 0 : index
    %c0_26 = arith.constant 0 : index
    %22 = vector.load %arg4[%c0_21, %c0_22, %c0_23, %c0_24, %c0_25, %c0_26] : memref<1x9x1x1x9x4xf32, #tpu.memory_space<vmem>>, vector<1x8x1x1x8x4xf32>
    %23 = vector.shape_cast %22 : vector<1x8x1x1x8x4xf32> to vector<8x8x4xf32>
    %c3 = arith.constant 3 : index
    %c0_27 = arith.constant 0 : index
    %24 = vector.load %arg6[%c3, %c0_27] : memref<9x4xf32, #tpu.memory_space<vmem>>, vector<1x4xf32>
    %25 = vector.shape_cast %24 : vector<1x4xf32> to vector<1x1x4xf32>
    %26 = vector.broadcast %25 : vector<1x1x4xf32> to vector<8x8x4xf32>
    %27 = arith.mulf %26, %23 : vector<8x8x4xf32>
    %28 = arith.addf %21, %27 : vector<8x8x4xf32>
    %c0_28 = arith.constant 0 : index
    %c0_29 = arith.constant 0 : index
    %c0_30 = arith.constant 0 : index
    %c0_31 = arith.constant 0 : index
    %c0_32 = arith.constant 0 : index
    %c0_33 = arith.constant 0 : index
    %29 = vector.load %arg5[%c0_28, %c0_29, %c0_30, %c0_31, %c0_32, %c0_33] : memref<1x9x1x1x9x4xf32, #tpu.memory_space<vmem>>, vector<1x8x1x1x8x4xf32>
    %30 = vector.shape_cast %29 : vector<1x8x1x1x8x4xf32> to vector<8x8x4xf32>
    %c4 = arith.constant 4 : index
    %c0_34 = arith.constant 0 : index
    %31 = vector.load %arg6[%c4, %c0_34] : memref<9x4xf32, #tpu.memory_space<vmem>>, vector<1x4xf32>
    %32 = vector.shape_cast %31 : vector<1x4xf32> to vector<1x1x4xf32>
    %33 = vector.broadcast %32 : vector<1x1x4xf32> to vector<8x8x4xf32>
    %34 = arith.mulf %33, %30 : vector<8x8x4xf32>
    %35 = arith.addf %28, %34 : vector<8x8x4xf32>
    %c0_35 = arith.constant 0 : index
    %c0_36 = arith.constant 0 : index
    %c0_37 = arith.constant 0 : index
    %c0_38 = arith.constant 0 : index
    %c1_39 = arith.constant 1 : index
    %c0_40 = arith.constant 0 : index
    %36 = vector.load %arg4[%c0_35, %c0_36, %c0_37, %c0_38, %c1_39, %c0_40] : memref<1x9x1x1x9x4xf32, #tpu.memory_space<vmem>>, vector<1x8x1x1x8x4xf32>
    %37 = vector.shape_cast %36 : vector<1x8x1x1x8x4xf32> to vector<8x8x4xf32>
    %c5 = arith.constant 5 : index
    %c0_41 = arith.constant 0 : index
    %38 = vector.load %arg6[%c5, %c0_41] : memref<9x4xf32, #tpu.memory_space<vmem>>, vector<1x4xf32>
    %39 = vector.shape_cast %38 : vector<1x4xf32> to vector<1x1x4xf32>
    %40 = vector.broadcast %39 : vector<1x1x4xf32> to vector<8x8x4xf32>
    %41 = arith.mulf %40, %37 : vector<8x8x4xf32>
    %42 = arith.addf %35, %41 : vector<8x8x4xf32>
    %c0_42 = arith.constant 0 : index
    %c1_43 = arith.constant 1 : index
    %c0_44 = arith.constant 0 : index
    %c0_45 = arith.constant 0 : index
    %c0_46 = arith.constant 0 : index
    %c0_47 = arith.constant 0 : index
    %43 = vector.load %arg2[%c0_42, %c1_43, %c0_44, %c0_45, %c0_46, %c0_47] : memref<1x9x1x1x9x4xf32, #tpu.memory_space<vmem>>, vector<1x8x1x1x8x4xf32>
    %44 = vector.shape_cast %43 : vector<1x8x1x1x8x4xf32> to vector<8x8x4xf32>
    %c6 = arith.constant 6 : index
    %c0_48 = arith.constant 0 : index
    %45 = vector.load %arg6[%c6, %c0_48] : memref<9x4xf32, #tpu.memory_space<vmem>>, vector<1x4xf32>
    %46 = vector.shape_cast %45 : vector<1x4xf32> to vector<1x1x4xf32>
    %47 = vector.broadcast %46 : vector<1x1x4xf32> to vector<8x8x4xf32>
    %48 = arith.mulf %47, %44 : vector<8x8x4xf32>
    %49 = arith.addf %42, %48 : vector<8x8x4xf32>
    %c0_49 = arith.constant 0 : index
    %c1_50 = arith.constant 1 : index
    %c0_51 = arith.constant 0 : index
    %c0_52 = arith.constant 0 : index
    %c0_53 = arith.constant 0 : index
    %c0_54 = arith.constant 0 : index
    %50 = vector.load %arg3[%c0_49, %c1_50, %c0_51, %c0_52, %c0_53, %c0_54] : memref<1x9x1x1x9x4xf32, #tpu.memory_space<vmem>>, vector<1x8x1x1x8x4xf32>
    %51 = vector.shape_cast %50 : vector<1x8x1x1x8x4xf32> to vector<8x8x4xf32>
    %c7 = arith.constant 7 : index
    %c0_55 = arith.constant 0 : index
    %52 = vector.load %arg6[%c7, %c0_55] : memref<9x4xf32, #tpu.memory_space<vmem>>, vector<1x4xf32>
    %53 = vector.shape_cast %52 : vector<1x4xf32> to vector<1x1x4xf32>
    %54 = vector.broadcast %53 : vector<1x1x4xf32> to vector<8x8x4xf32>
    %55 = arith.mulf %54, %51 : vector<8x8x4xf32>
    %56 = arith.addf %49, %55 : vector<8x8x4xf32>
    %c0_56 = arith.constant 0 : index
    %c1_57 = arith.constant 1 : index
    %c0_58 = arith.constant 0 : index
    %c0_59 = arith.constant 0 : index
    %c1_60 = arith.constant 1 : index
    %c0_61 = arith.constant 0 : index
    %57 = vector.load %arg2[%c0_56, %c1_57, %c0_58, %c0_59, %c1_60, %c0_61] : memref<1x9x1x1x9x4xf32, #tpu.memory_space<vmem>>, vector<1x8x1x1x8x4xf32>
    %58 = vector.shape_cast %57 : vector<1x8x1x1x8x4xf32> to vector<8x8x4xf32>
    %c8 = arith.constant 8 : index
    %c0_62 = arith.constant 0 : index
    %59 = vector.load %arg6[%c8, %c0_62] : memref<9x4xf32, #tpu.memory_space<vmem>>, vector<1x4xf32>
    %60 = vector.shape_cast %59 : vector<1x4xf32> to vector<1x1x4xf32>
    %61 = vector.broadcast %60 : vector<1x1x4xf32> to vector<8x8x4xf32>
    %62 = arith.mulf %61, %58 : vector<8x8x4xf32>
    %63 = arith.addf %56, %62 : vector<8x8x4xf32>
    %c0_63 = arith.constant 0 : index
    %c0_64 = arith.constant 0 : index
    %c0_65 = arith.constant 0 : index
    %c0_66 = arith.constant 0 : index
    %64 = vector.load %arg7[%c0_63, %c0_64, %c0_65, %c0_66] : memref<1x8x8x4xf32, #tpu.memory_space<vmem>>, vector<1x8x8x4xf32>
    %65 = vector.shape_cast %64 : vector<1x8x8x4xf32> to vector<8x8x4xf32>
    %66 = vector.shape_cast %63 : vector<8x8x4xf32> to vector<1x8x8x4xf32>
    tpu.vector_store %arg7[%c0_63, %c0_64, %c0_65, %c0_66], %66 {strides = array<i32>} : memref<1x8x8x4xf32, #tpu.memory_space<vmem>>, vector<1x8x8x4xf32>,
    %cst_67 = arith.constant dense<0.000000e+00> : vector<8x4xf32>
    %67 = vector.multi_reduction <add>, %63, %cst_67 [0] : vector<8x8x4xf32> to vector<8x4xf32>
    %cst_68 = arith.constant dense<0.000000e+00> : vector<4xf32>
    %68 = vector.multi_reduction <add>, %67, %cst_68 [0] : vector<8x4xf32> to vector<4xf32>
    %69 = vector.shape_cast %68 : vector<4xf32> to vector<1x4xf32>
    %70 = arith.mulf %63, %63 : vector<8x8x4xf32>
    %cst_69 = arith.constant dense<0.000000e+00> : vector<8x4xf32>
    %71 = vector.multi_reduction <add>, %70, %cst_69 [0] : vector<8x8x4xf32> to vector<8x4xf32>
    %cst_70 = arith.constant dense<0.000000e+00> : vector<4xf32>
    %72 = vector.multi_reduction <add>, %71, %cst_70 [0] : vector<8x4xf32> to vector<4xf32>
    %73 = vector.shape_cast %72 : vector<4xf32> to vector<1x4xf32>
    %c0_71 = arith.constant 0 : index
    %c0_72 = arith.constant 0 : index
    %c0_73 = arith.constant 0 : index
    %74 = vector.load %arg8[%c0_71, %c0_72, %c0_73] : memref<1x2x4xf32, #tpu.memory_space<vmem>>, vector<1x1x4xf32>
    %75 = vector.shape_cast %74 : vector<1x1x4xf32> to vector<1x4xf32>
    %76 = vector.shape_cast %69 : vector<1x4xf32> to vector<1x1x4xf32>
    tpu.vector_store %arg8[%c0_71, %c0_72, %c0_73], %76 {strides = array<i32>} : memref<1x2x4xf32, #tpu.memory_space<vmem>>, vector<1x1x4xf32>,
    %c0_74 = arith.constant 0 : index
    %c1_75 = arith.constant 1 : index
    %c0_76 = arith.constant 0 : index
    %77 = vector.load %arg8[%c0_74, %c1_75, %c0_76] : memref<1x2x4xf32, #tpu.memory_space<vmem>>, vector<1x1x4xf32>
    %78 = vector.shape_cast %77 : vector<1x1x4xf32> to vector<1x4xf32>
    %79 = vector.shape_cast %73 : vector<1x4xf32> to vector<1x1x4xf32>
    tpu.vector_store %arg8[%c0_74, %c1_75, %c0_76], %79 {strides = array<i32>} : memref<1x2x4xf32, #tpu.memory_space<vmem>>, vector<1x1x4xf32>,
    return
  }
  func.func @transform_0(%arg0: i32, %arg1: i32) -> (i32, i32, i32, i32, i32, i32) {
    %c0_i32 = arith.constant 0 : i32
    %c0_i32_0 = arith.constant 0 : i32
    %c0_i32_1 = arith.constant 0 : i32
    %c0_i32_2 = arith.constant 0 : i32
    %c0_i32_3 = arith.constant 0 : i32
    return %arg0, %c0_i32, %c0_i32_0, %c0_i32_1, %c0_i32_2, %arg1 : i32, i32, i32, i32, i32, i32
  }
  func.func @transform_1(%arg0: i32, %arg1: i32) -> (i32, i32, i32, i32, i32, i32) {
    %c0_i32 = arith.constant 0 : i32
    %c0_i32_0 = arith.constant 0 : i32
    %c1_i32 = arith.constant 1 : i32
    %c0_i32_1 = arith.constant 0 : i32
    %c0_i32_2 = arith.constant 0 : i32
    return %arg0, %c0_i32, %c0_i32_0, %c1_i32, %c0_i32_1, %arg1 : i32, i32, i32, i32, i32, i32
  }
  func.func @transform_2(%arg0: i32, %arg1: i32) -> (i32, i32, i32, i32, i32, i32) {
    %c0_i32 = arith.constant 0 : i32
    %c1_i32 = arith.constant 1 : i32
    %c0_i32_0 = arith.constant 0 : i32
    %c0_i32_1 = arith.constant 0 : i32
    %c0_i32_2 = arith.constant 0 : i32
    return %arg0, %c0_i32, %c1_i32, %c0_i32_0, %c0_i32_1, %arg1 : i32, i32, i32, i32, i32, i32
  }
  func.func @transform_3(%arg0: i32, %arg1: i32) -> (i32, i32, i32, i32, i32, i32) {
    %c0_i32 = arith.constant 0 : i32
    %c1_i32 = arith.constant 1 : i32
    %c1_i32_0 = arith.constant 1 : i32
    %c0_i32_1 = arith.constant 0 : i32
    %c0_i32_2 = arith.constant 0 : i32
    return %arg0, %c0_i32, %c1_i32, %c1_i32_0, %c0_i32_1, %arg1 : i32, i32, i32, i32, i32, i32
  }
  func.func @transform_4(%arg0: i32, %arg1: i32) -> (i32, i32) {
    %c0_i32 = arith.constant 0 : i32
    %c0_i32_0 = arith.constant 0 : i32
    return %c0_i32, %arg1 : i32, i32
  }
  func.func @transform_5(%arg0: i32, %arg1: i32) -> (i32, i32, i32, i32) {
    %c0_i32 = arith.constant 0 : i32
    %c0_i32_0 = arith.constant 0 : i32
    %c0_i32_1 = arith.constant 0 : i32
    return %arg0, %c0_i32, %c0_i32_0, %arg1 : i32, i32, i32, i32
  }
  func.func @transform_6(%arg0: i32, %arg1: i32) -> (i32, i32, i32) {
    %c0_i32 = arith.constant 0 : i32
    %c0_i32_0 = arith.constant 0 : i32
    return %arg0, %c0_i32, %arg1 : i32, i32, i32
  }
}

module attributes {stable_mosaic.version = 11 : i64} {
  func.func @_bn_apply_kernel(%arg0: i32, %arg1: i32, %arg2: memref<1x8x8x4xf32, #tpu.memory_space<vmem>>, %arg3: memref<1x4xf32, #tpu.memory_space<vmem>>, %arg4: memref<1x4xf32, #tpu.memory_space<vmem>>, %arg5: memref<1x8x8x4xf32, #tpu.memory_space<vmem>>) attributes {dimension_semantics = [#tpu.dimension_semantics<parallel>, #tpu.dimension_semantics<parallel>], iteration_bounds = array<i64: 2, 1>, scalar_prefetch = 0 : i64, scratch_operands = 0 : i64, tpu.core_type = #tpu.core_type<tc>, window_params = [{transform_indices = @transform_0, window_bounds = array<i64: 1, 8, 8, 4>}, {transform_indices = @transform_1, window_bounds = array<i64: 1, 4>}, {transform_indices = @transform_2, window_bounds = array<i64: 1, 4>}, {transform_indices = @transform_3, window_bounds = array<i64: 1, 8, 8, 4>}]} {
    %c0 = arith.constant 0 : index
    %c0_0 = arith.constant 0 : index
    %c0_1 = arith.constant 0 : index
    %c0_2 = arith.constant 0 : index
    %0 = vector.load %arg2[%c0, %c0_0, %c0_1, %c0_2] : memref<1x8x8x4xf32, #tpu.memory_space<vmem>>, vector<1x8x8x4xf32>
    %1 = vector.shape_cast %0 : vector<1x8x8x4xf32> to vector<8x8x4xf32>
    %c0_3 = arith.constant 0 : index
    %c0_4 = arith.constant 0 : index
    %2 = vector.load %arg3[%c0_3, %c0_4] : memref<1x4xf32, #tpu.memory_space<vmem>>, vector<1x4xf32>
    %3 = vector.shape_cast %2 : vector<1x4xf32> to vector<1x1x4xf32>
    %4 = vector.broadcast %3 : vector<1x1x4xf32> to vector<8x8x4xf32>
    %5 = arith.mulf %1, %4 : vector<8x8x4xf32>
    %c0_5 = arith.constant 0 : index
    %c0_6 = arith.constant 0 : index
    %6 = vector.load %arg4[%c0_5, %c0_6] : memref<1x4xf32, #tpu.memory_space<vmem>>, vector<1x4xf32>
    %7 = vector.shape_cast %6 : vector<1x4xf32> to vector<1x1x4xf32>
    %8 = vector.broadcast %7 : vector<1x1x4xf32> to vector<8x8x4xf32>
    %9 = arith.addf %5, %8 : vector<8x8x4xf32>
    %c0_7 = arith.constant 0 : index
    %c0_8 = arith.constant 0 : index
    %c0_9 = arith.constant 0 : index
    %c0_10 = arith.constant 0 : index
    %10 = vector.load %arg5[%c0_7, %c0_8, %c0_9, %c0_10] : memref<1x8x8x4xf32, #tpu.memory_space<vmem>>, vector<1x8x8x4xf32>
    %11 = vector.shape_cast %10 : vector<1x8x8x4xf32> to vector<8x8x4xf32>
    %12 = vector.shape_cast %9 : vector<8x8x4xf32> to vector<1x8x8x4xf32>
    tpu.vector_store %arg5[%c0_7, %c0_8, %c0_9, %c0_10], %12 {strides = array<i32>} : memref<1x8x8x4xf32, #tpu.memory_space<vmem>>, vector<1x8x8x4xf32>,
    return
  }
  func.func @transform_0(%arg0: i32, %arg1: i32) -> (i32, i32, i32, i32) {
    %c0_i32 = arith.constant 0 : i32
    %c0_i32_0 = arith.constant 0 : i32
    %c0_i32_1 = arith.constant 0 : i32
    return %arg0, %c0_i32, %c0_i32_0, %arg1 : i32, i32, i32, i32
  }
  func.func @transform_1(%arg0: i32, %arg1: i32) -> (i32, i32) {
    %c0_i32 = arith.constant 0 : i32
    %c0_i32_0 = arith.constant 0 : i32
    return %c0_i32, %arg1 : i32, i32
  }
  func.func @transform_2(%arg0: i32, %arg1: i32) -> (i32, i32) {
    %c0_i32 = arith.constant 0 : i32
    %c0_i32_0 = arith.constant 0 : i32
    return %c0_i32, %arg1 : i32, i32
  }
  func.func @transform_3(%arg0: i32, %arg1: i32) -> (i32, i32, i32, i32) {
    %c0_i32 = arith.constant 0 : i32
    %c0_i32_0 = arith.constant 0 : i32
    %c0_i32_1 = arith.constant 0 : i32
    return %arg0, %c0_i32, %c0_i32_0, %arg1 : i32, i32, i32, i32
  }
}

</mosaic_0001>

<llo_original>
// kernel: downblock.3
$region0: #{downblock.3}
  #allocation0 [shape = 'u32[]', space=smem, size = 0x4, offset = 0x4, fixed_abs, tag = 'smem constant byte address 0x4 - core index']
  #allocation1 [shape = 'u32[144,128]{1,0:T(1,128)}', space=vmem, size = 0x12000, scoped, tag = 'internal scratch']
  %s0 = inlined_call_operand.vmem [shape: f32[2,8,8,4], index: 0, kind: input, shape index: {}]
  %s1 = inlined_call_operand.vmem [shape: f32[1,4], index: 1, kind: input, shape index: {}]
  %s2 = inlined_call_operand.vmem [shape: f32[1,4], index: 2, kind: input, shape index: {}]
  %s3 = inlined_call_operand.vmem [shape: f32[2,8,8,4], index: 3, kind: output, shape index: {}]
  %s4 = sld [smem:[#allocation0]]
  $region45: #{downblock.3} parent=0
    _
  %s6 = ssub.s32 1, %s4
  %s7 = scalar_select 0, %s6, %s4
  loop: start=0, step=1, limit=4
  $region2: #{downblock.3} parent=0 // loop_pre_header
    _
  $region3: #{downblock.3} parent=0 // loop_header
    %s9 = sphi 0, %s13
    %p10 = scmp.ge.s32.totalorder %s9, 4
    %s16 = sphi 0, %s28
    %s17 = sphi 0, %s24
    %s18 = sphi 0, %s16
    %s19 = sphi 0, %s17
    %s20 = sphi 0, %s18
    %s21 = sphi 0, %s19
    %s33 = sphi 0, %s35
    %s36 = sphi 0, %s33
    %s37 = sphi 0, %s36
    %s53 = sphi 0, %s37
    %s59 = sphi 0, %s61
    %s62 = sphi 0, %s59
    %s63 = sphi 0, %s62
    %s79 = sphi 0, %s63
    %s85 = sphi 0, %s87
    %s88 = sphi 0, %s85
    %s89 = sphi 0, %s88
    %s105 = sphi 0, %s89
    %s113 = sphi 0, %s115
    %s116 = sphi 0, %s113
    %s117 = sphi 0, %s116
    %s133 = sphi 0, %s117
  $region4: #{downblock.3} parent=0 // loop_header_branch
    %12 = sbr.rel (%p10) target = $region8
  $region5: #{downblock.3} parent=0 // loop_body
    %s14 = ssub.s32 %s9, 1
    %s15 = ssub.s32 %s9, 2
    %s22 = sadd.s32 1, %s17
    %p23 = scmp.ge.s32.totalorder %s22, 1
    %s24 = scalar_select %p23, 0, %s22
    %s25 = sadd.s32 1, %s16
    %s26 = scalar_select %p23, %s25, %s16
    %p27 = scmp.ge.s32.totalorder %s26, 2
    %s28 = scalar_select %p27, 0, %s26
    %s29 = ssub.s32 %s16, %s28
    %s30 = ssub.s32 %s17, %s24
    %s31 = sor.u32 %s29, %s30
    %p32 = scmp.eq.s32.totalorder %s31, 0
    %s34 = sadd.s32 %s33, 1
    %s35 = scalar_select %p32, %s33, %s34
    %p38 = pneg %p32
    %p39 = scmp.eq.s32.totalorder %s9, 1
    %p40 = por %p38, %p39
    %p41 = scmp.ne.s32.totalorder %s33, %s36
    %p42 = scmp.eq.s32.totalorder %s9, 0
    %p43 = por %p41, %p42
    %p44 = scmp.ne.s32.totalorder %s33, %s36
    %p45 = scmp.eq.s32.totalorder %s14, 1
    %p46 = por %p44, %p45
    %p47 = scmp.ne.s32.totalorder %s36, %s37
    %p48 = scmp.eq.s32.totalorder %s14, 0
    %p49 = por %p47, %p48
    %p50 = scmp.ne.s32.totalorder %s36, %s37
    %p51 = scmp.eq.s32.totalorder %s15, 1
    %p52 = por %p50, %p51
    %p54 = scmp.ne.s32.totalorder %s37, %s53
    %p55 = scmp.eq.s32.totalorder %s15, 0
    %p56 = por %p54, %p55
    %s57 = ssub.s32 %s17, %s24
    %p58 = scmp.eq.s32.totalorder %s57, 0
    %s60 = sadd.s32 %s59, 1
    %s61 = scalar_select %p58, %s59, %s60
    %p64 = pneg %p58
    %p65 = scmp.eq.s32.totalorder %s9, 1
    %p66 = por %p64, %p65
    %p67 = scmp.ne.s32.totalorder %s59, %s62
    %p68 = scmp.eq.s32.totalorder %s9, 0
    %p69 = por %p67, %p68
    %p70 = scmp.ne.s32.totalorder %s59, %s62
    %p71 = scmp.eq.s32.totalorder %s14, 1
    %p72 = por %p70, %p71
    %p73 = scmp.ne.s32.totalorder %s62, %s63
    %p74 = scmp.eq.s32.totalorder %s14, 0
    %p75 = por %p73, %p74
    %p76 = scmp.ne.s32.totalorder %s62, %s63
    %p77 = scmp.eq.s32.totalorder %s15, 1
    %p78 = por %p76, %p77
    %p80 = scmp.ne.s32.totalorder %s63, %s79
    %p81 = scmp.eq.s32.totalorder %s15, 0
    %p82 = por %p80, %p81
    %s83 = ssub.s32 %s17, %s24
    %p84 = scmp.eq.s32.totalorder %s83, 0
    %s86 = sadd.s32 %s85, 1
    %s87 = scalar_select %p84, %s85, %s86
    %p90 = pneg %p84
    %p91 = scmp.eq.s32.totalorder %s9, 1
    %p92 = por %p90, %p91
    %p93 = scmp.ne.s32.totalorder %s85, %s88
    %p94 = scmp.eq.s32.totalorder %s9, 0
    %p95 = por %p93, %p94
    %p96 = scmp.ne.s32.totalorder %s85, %s88
    %p97 = scmp.eq.s32.totalorder %s14, 1
    %p98 = por %p96, %p97
    %p99 = scmp.ne.s32.totalorder %s88, %s89
    %p100 = scmp.eq.s32.totalorder %s14, 0
    %p101 = por %p99, %p100
    %p102 = scmp.ne.s32.totalorder %s88, %s89
    %p103 = scmp.eq.s32.totalorder %s15, 1
    %p104 = por %p102, %p103
    %p106 = scmp.ne.s32.totalorder %s89, %s105
    %p107 = scmp.eq.s32.totalorder %s15, 0
    %p108 = por %p106, %p107
    %s109 = ssub.s32 %s16, %s28
    %s110 = ssub.s32 %s17, %s24
    %s111 = sor.u32 %s109, %s110
    %p112 = scmp.eq.s32.totalorder %s111, 0
    %s114 = sadd.s32 %s113, 1
    %s115 = scalar_select %p112, %s113, %s114
    %p118 = pneg %p112
    %p119 = scmp.eq.s32.totalorder %s9, 1
    %p120 = por %p118, %p119
    %p121 = scmp.ne.s32.totalorder %s113, %s116
    %p122 = scmp.eq.s32.totalorder %s9, 0
    %p123 = por %p121, %p122
    %p124 = scmp.ne.s32.totalorder %s113, %s116
    %p125 = scmp.eq.s32.totalorder %s14, 1
    %p126 = por %p124, %p125
    %p127 = scmp.ne.s32.totalorder %s116, %s117
    %p128 = scmp.eq.s32.totalorder %s14, 0
    %p129 = por %p127, %p128
    %p130 = scmp.ne.s32.totalorder %s116, %s117
    %p131 = scmp.eq.s32.totalorder %s15, 1
    %p132 = por %p130, %p131
    %p134 = scmp.ne.s32.totalorder %s117, %s133
    %p135 = scmp.eq.s32.totalorder %s15, 0
    %p136 = por %p134, %p135
    %p137 = scmp.le.s32.totalorder 1, %s9
    %p138 = scmp.lt.s32.totalorder %s9, 3
    %p139 = pnand %p137, %p138
    %p140 = pneg %p139
    // Predicated region
    $region9: #{downblock.3} parent=5 // pred_check
      _
    $region10: #{downblock.3} parent=5 // pred_check_branch
      %142 = sbr.rel (%p139) target = $region12
    $region11: #{downblock.3} parent=5 // pred_region
      %s143 = ssub.s32 %s9, 1
      // Predicated region
      $region13: #{downblock.3} parent=11 // pred_check
        %p144 = pneg %p75
      $region14: #{downblock.3} parent=11 // pred_check_branch
        %146 = sbr.rel (%p144) target = $region16
      $region15: #{downblock.3} parent=11 // pred_region
        %p147 = scmp.lt.s32.totalorder %s19, 0
        %s148 = scalar_select %p147, %s19, 0
        %s149 = scalar_lea.vmem %s1, %s148
      $region16: #{downblock.3} parent=11 // pred_fallthru
        _
      // Predicated region
      $region17: #{downblock.3} parent=11 // pred_check
        %p150 = pneg %p101
      $region18: #{downblock.3} parent=11 // pred_check_branch
        %152 = sbr.rel (%p150) target = $region20
      $region19: #{downblock.3} parent=11 // pred_region
        %p153 = scmp.lt.s32.totalorder %s19, 0
        %s154 = scalar_select %p153, %s19, 0
        %s155 = scalar_lea.vmem %s2, %s154
      $region20: #{downblock.3} parent=11 // pred_fallthru
        _
    $region12: #{downblock.3} parent=5 // pred_fallthru
      _
    %p156 = scmp.lt.s32.totalorder %s9, 2
    // Predicated region
    $region21: #{downblock.3} parent=5 // pred_check
      %p157 = pneg %p156
    $region22: #{downblock.3} parent=5 // pred_check_branch
      %159 = sbr.rel (%p157) target = $region24
    $region23: #{downblock.3} parent=5 // pred_region
      // Predicated region
      $region25: #{downblock.3} parent=23 // pred_check
        %p160 = pneg %p43
      $region26: #{downblock.3} parent=23 // pred_check_branch
        %162 = sbr.rel (%p160) target = $region28
      $region27: #{downblock.3} parent=23 // pred_region
        %p163 = scmp.lt.s32.totalorder %s16, 1
        %s164 = scalar_select %p163, %s16, 1
        %p165 = scmp.lt.s32.totalorder %s17, 0
        %s166 = scalar_select %p165, %s17, 0
        %s167 = smul.addr %s164, 8
        %s168 = sadd.s32 %s166, %s167
        %s169 = smul.addr %s168, 8
        %s170 = scalar_lea.vmem %s0, %s169
      $region28: #{downblock.3} parent=23 // pred_fallthru
        _
    $region24: #{downblock.3} parent=5 // pred_fallthru
      _
    %p171 = scmp.le.s32.totalorder 1, %s9
    %p172 = scmp.lt.s32.totalorder %s9, 3
    %p173 = pnand %p171, %p172
    %p174 = pneg %p173
    // Predicated region
    $region29: #{downblock.3} parent=5 // pred_check
      _
    $region30: #{downblock.3} parent=5 // pred_check_branch
      %176 = sbr.rel (%p173) target = $region32
    $region31: #{downblock.3} parent=5 // pred_region
      %s177 = ssub.s32 %s9, 1
      %p178 = scmp.lt.s32.totalorder %s18, 1
      %s179 = scalar_select %p178, %s18, 1
      %p180 = scmp.lt.s32.totalorder %s19, 0
      %s181 = scalar_select %p180, %s19, 0
      %s182 = smul.addr %s179, 8
      %s183 = sadd.s32 %s181, %s182
      %s184 = smul.addr %s183, 8
      %s185 = scalar_lea.vmem %s0, %s184
      %p186 = pneg %p49
      %p187 = pneg %p46
      %p188 = scmp.lt.s32.totalorder %s19, 0
      %s189 = scalar_select %p188, %s19, 0
      %s190 = scalar_lea.vmem %s1, %s189
      %p191 = pneg %p75
      %p192 = pneg %p72
      %p193 = scmp.lt.s32.totalorder %s19, 0
      %s194 = scalar_select %p193, %s19, 0
      %s195 = scalar_lea.vmem %s2, %s194
      %p196 = pneg %p101
      %p197 = pneg %p98
      %p198 = pneg %p129
      %p199 = pneg %p126
      %p200 = scmp.lt.s32.totalorder %s18, 1
      %s201 = scalar_select %p200, %s18, 1
      %p202 = scmp.lt.s32.totalorder %s19, 0
      %s203 = scalar_select %p202, %s19, 0
      %s204 = smul.addr %s201, 8
      %s205 = sadd.s32 %s203, %s204
      %s206 = smul.addr %s205, 8
      %s207 = scalar_lea.vmem %s3, %s206
      %p208 = scmp.lt.s32.totalorder %s18, 1
      %s209 = scalar_select %p208, %s18, 1
      %p210 = scmp.lt.s32.totalorder %s19, 0
      %s211 = scalar_select %p210, %s19, 0
      %s212 = smul.addr %s209, 8
      %s213 = sadd.s32 %s211, %s212
      %s214 = smul.addr %s213, 8
      %s215 = scalar_lea.vmem %s0, %s214
      %p216 = scmp.lt.s32.totalorder %s19, 0
      %s217 = scalar_select %p216, %s19, 0
      %s218 = scalar_lea.vmem %s1, %s217
      %p219 = scmp.lt.s32.totalorder %s19, 0
      %s220 = scalar_select %p219, %s19, 0
      %s221 = scalar_lea.vmem %s2, %s220
      %p222 = scmp.lt.s32.totalorder %s18, 1
      %s223 = scalar_select %p222, %s18, 1
      %p224 = scmp.lt.s32.totalorder %s19, 0
      %s225 = scalar_select %p224, %s19, 0
      %s226 = smul.addr %s223, 8
      %s227 = sadd.s32 %s225, %s226
      %s228 = smul.addr %s227, 8
      %s229 = scalar_lea.vmem %s3, %s228
      %v230 = vld [vmem:[%s215] sm:$0xff]
      %v231 = vld [vmem:[%s215 + $0x8] sm:$0xff]
      %v232 = vld [vmem:[%s215 + $0x10] sm:$0xff]
      %v233 = vld [vmem:[%s215 + $0x18] sm:$0xff]
      %v234 = vld [vmem:[%s215 + $0x20] sm:$0xff]
      %v235 = vld [vmem:[%s215 + $0x28] sm:$0xff]
      %v236 = vld [vmem:[%s215 + $0x30] sm:$0xff]
      %v237 = vld [vmem:[%s215 + $0x38] sm:$0xff]
      %v238 = vld [vmem:[%s218] sm:$0x1]
      %v240 = vlaneseq
      %v241 = vshrl.u32 %v240, 7
      %v242 = vsub.s32 0, %v241
      %v243 = vrot.slane %v238, %v242
      %v245 = vmul.f32 %v230, %v243
      %v246 = vmul.f32 %v231, %v243
      %v247 = vmul.f32 %v232, %v243
      %v248 = vmul.f32 %v233, %v243
      %v249 = vmul.f32 %v234, %v243
      %v250 = vmul.f32 %v235, %v243
      %v251 = vmul.f32 %v236, %v243
      %v252 = vmul.f32 %v237, %v243
      %v253 = vld [vmem:[%s221] sm:$0x1]
      %v255 = vlaneseq
      %v256 = vshrl.u32 %v255, 7
      %v257 = vsub.s32 0, %v256
      %v258 = vrot.slane %v253, %v257
      %v260 = vadd.f32 %v245, %v258
      %v261 = vadd.f32 %v246, %v258
      %v262 = vadd.f32 %v247, %v258
      %v263 = vadd.f32 %v248, %v258
      %v264 = vadd.f32 %v249, %v258
      %v265 = vadd.f32 %v250, %v258
      %v266 = vadd.f32 %v251, %v258
      %v267 = vadd.f32 %v252, %v258
      %vm268 = vcmask 31744
      %269 = vst.msk [vmem:[%s229] sm:$0xff] %vm268, %v260
      %270 = vst.msk [vmem:[%s229 + $0x8] sm:$0xff] %vm268, %v261
      %271 = vst.msk [vmem:[%s229 + $0x10] sm:$0xff] %vm268, %v262
      %272 = vst.msk [vmem:[%s229 + $0x18] sm:$0xff] %vm268, %v263
      %273 = vst.msk [vmem:[%s229 + $0x20] sm:$0xff] %vm268, %v264
      %274 = vst.msk [vmem:[%s229 + $0x28] sm:$0xff] %vm268, %v265
      %275 = vst.msk [vmem:[%s229 + $0x30] sm:$0xff] %vm268, %v266
      %276 = vst.msk [vmem:[%s229 + $0x38] sm:$0xff] %vm268, %v267
      %p277 = scmp.lt.s32.totalorder %s18, 1
      %s278 = scalar_select %p277, %s18, 1
      %p279 = scmp.lt.s32.totalorder %s19, 0
      %s280 = scalar_select %p279, %s19, 0
      %s281 = smul.addr %s278, 8
      %s282 = sadd.s32 %s280, %s281
      %s283 = smul.addr %s282, 8
      %s284 = scalar_lea.vmem %s3, %s283
      // Predicated region
      $region33: #{downblock.3} parent=31 // pred_check
        %p285 = pneg %p126
      $region34: #{downblock.3} parent=31 // pred_check_branch
        %287 = sbr.rel (%p285) target = $region36
      $region35: #{downblock.3} parent=31 // pred_region
        _
      $region36: #{downblock.3} parent=31 // pred_fallthru
        _
    $region32: #{downblock.3} parent=5 // pred_fallthru
      _
    %p288 = scmp.le.s32.totalorder 2, %s9
    // Predicated region
    $region37: #{downblock.3} parent=5 // pred_check
      %p289 = pneg %p288
    $region38: #{downblock.3} parent=5 // pred_check_branch
      %291 = sbr.rel (%p289) target = $region40
    $region39: #{downblock.3} parent=5 // pred_region
      %s292 = ssub.s32 %s9, 2
      // Predicated region
      $region41: #{downblock.3} parent=39 // pred_check
        %p293 = pneg %p132
      $region42: #{downblock.3} parent=39 // pred_check_branch
        %295 = sbr.rel (%p293) target = $region44
      $region43: #{downblock.3} parent=39 // pred_region
        %p296 = scmp.lt.s32.totalorder %s20, 1
        %s297 = scalar_select %p296, %s20, 1
        %p298 = scmp.lt.s32.totalorder %s21, 0
        %s299 = scalar_select %p298, %s21, 0
        %s300 = smul.addr %s297, 8
        %s301 = sadd.s32 %s299, %s300
        %s302 = smul.addr %s301, 8
        %s303 = scalar_lea.vmem %s3, %s302
      $region44: #{downblock.3} parent=39 // pred_fallthru
        _
    $region40: #{downblock.3} parent=5 // pred_fallthru
      _
  $region6: #{downblock.3} parent=0 // loop_footer
    %s13 = sadd.s32 1, %s9
  $region7: #{downblock.3} parent=0 // loop_footer_branch
    %8 = sbr.rel target = $region3
  $region8: #{downblock.3} parent=0 // loop_exit
    _

// kernel: downblock.2
$region0: #{downblock.2}
  #allocation0 [shape = 'u32[]', space=smem, size = 0x4, offset = 0x4, fixed_abs, tag = 'smem constant byte address 0x4 - core index']
  #allocation1 [shape = 'u32[144,128]{1,0:T(1,128)}', space=vmem, size = 0x12000, scoped, tag = 'internal scratch']
  %s0 = inlined_call_operand.vmem [shape: f32[2,9,2,2,9,4], index: 0, kind: input, shape index: {}, may-alias: {0,1,2,3}]
  %s1 = inlined_call_operand.vmem [shape: f32[2,9,2,2,9,4], index: 1, kind: input, shape index: {}, may-alias: {0,1,2,3}]
  %s2 = inlined_call_operand.vmem [shape: f32[2,9,2,2,9,4], index: 2, kind: input, shape index: {}, may-alias: {0,1,2,3}]
  %s3 = inlined_call_operand.vmem [shape: f32[2,9,2,2,9,4], index: 3, kind: input, shape index: {}, may-alias: {0,1,2,3}]
  %s4 = inlined_call_operand.vmem [shape: f32[9,4], index: 4, kind: input, shape index: {}]
  %s5 = inlined_call_operand.vmem [shape: f32[2,8,8,4], index: 5, kind: output, shape index: {0}]
  %s6 = inlined_call_operand.vmem [shape: f32[2,2,4], index: 6, kind: output, shape index: {1}]
  %7 = xla_tuple %s5, %s6
  %s8 = sld [smem:[#allocation0]]
  $region213: #{downblock.2} parent=0
    _
  %s10 = ssub.s32 1, %s8
  %s11 = scalar_select 0, %s10, %s8
  $region1: #{downblock.2} parent=0
    #allocation2 [shape = 'u8[147456]{0}', space=vmem, size = 0x24000, scoped, tag = 'input window, operand 0']
    #allocation3 [shape = 'u8[147456]{0}', space=vmem, size = 0x24000, scoped, tag = 'input window, operand 1']
    #allocation4 [shape = 'u8[147456]{0}', space=vmem, size = 0x24000, scoped, tag = 'input window, operand 2']
    #allocation5 [shape = 'u8[147456]{0}', space=vmem, size = 0x24000, scoped, tag = 'input window, operand 3']
    loop: start=0, step=1, limit=4
    $region2: #{downblock.2} parent=1 // loop_pre_header
      _
    $region3: #{downblock.2} parent=1 // loop_header
      %s13 = sphi 0, %s17
      %p14 = scmp.ge.s32.totalorder %s13, 4
      %s20 = sphi 0, %s32
      %s21 = sphi 0, %s28
      %s22 = sphi 0, %s20
      %s23 = sphi 0, %s21
      %s24 = sphi 0, %s22
      %s25 = sphi 0, %s23
      %s37 = sphi 0, %s39
      %s40 = sphi 0, %s37
      %s41 = sphi 0, %s40
      %s57 = sphi 0, %s41
      %s65 = sphi 0, %s67
      %s68 = sphi 0, %s65
      %s69 = sphi 0, %s68
      %s85 = sphi 0, %s69
      %s93 = sphi 0, %s95
      %s96 = sphi 0, %s93
      %s97 = sphi 0, %s96
      %s113 = sphi 0, %s97
      %s121 = sphi 0, %s123
      %s124 = sphi 0, %s121
      %s125 = sphi 0, %s124
      %s141 = sphi 0, %s125
      %s147 = sphi 0, %s149
      %s150 = sphi 0, %s147
      %s151 = sphi 0, %s150
      %s167 = sphi 0, %s151
      %s175 = sphi 0, %s177
      %s178 = sphi 0, %s175
      %s179 = sphi 0, %s178
      %s195 = sphi 0, %s179
      %s203 = sphi 0, %s205
      %s206 = sphi 0, %s203
      %s207 = sphi 0, %s206
      %s223 = sphi 0, %s207
    $region4: #{downblock.2} parent=1 // loop_header_branch
      %16 = sbr.rel (%p14) target = $region8
    $region5: #{downblock.2} parent=1 // loop_body
      %s18 = ssub.s32 %s13, 1
      %s19 = ssub.s32 %s13, 2
      %s26 = sadd.s32 1, %s21
      %p27 = scmp.ge.s32.totalorder %s26, 1
      %s28 = scalar_select %p27, 0, %s26
      %s29 = sadd.s32 1, %s20
      %s30 = scalar_select %p27, %s29, %s20
      %p31 = scmp.ge.s32.totalorder %s30, 2
      %s32 = scalar_select %p31, 0, %s30
      %s33 = ssub.s32 %s20, %s32
      %s34 = ssub.s32 %s21, %s28
      %s35 = sor.u32 %s33, %s34
      %p36 = scmp.eq.s32.totalorder %s35, 0
      %s38 = sadd.s32 %s37, 1
      %s39 = scalar_select %p36, %s37, %s38
      %p42 = pneg %p36
      %p43 = scmp.eq.s32.totalorder %s13, 1
      %p44 = por %p42, %p43
      %p45 = scmp.ne.s32.totalorder %s37, %s40
      %p46 = scmp.eq.s32.totalorder %s13, 0
      %p47 = por %p45, %p46
      %p48 = scmp.ne.s32.totalorder %s37, %s40
      %p49 = scmp.eq.s32.totalorder %s18, 1
      %p50 = por %p48, %p49
      %p51 = scmp.ne.s32.totalorder %s40, %s41
      %p52 = scmp.eq.s32.totalorder %s18, 0
      %p53 = por %p51, %p52
      %p54 = scmp.ne.s32.totalorder %s40, %s41
      %p55 = scmp.eq.s32.totalorder %s19, 1
      %p56 = por %p54, %p55
      %p58 = scmp.ne.s32.totalorder %s41, %s57
      %p59 = scmp.eq.s32.totalorder %s19, 0
      %p60 = por %p58, %p59
      %s61 = ssub.s32 %s20, %s32
      %s62 = ssub.s32 %s21, %s28
      %s63 = sor.u32 %s61, %s62
      %p64 = scmp.eq.s32.totalorder %s63, 0
      %s66 = sadd.s32 %s65, 1
      %s67 = scalar_select %p64, %s65, %s66
      %p70 = pneg %p64
      %p71 = scmp.eq.s32.totalorder %s13, 1
      %p72 = por %p70, %p71
      %p73 = scmp.ne.s32.totalorder %s65, %s68
      %p74 = scmp.eq.s32.totalorder %s13, 0
      %p75 = por %p73, %p74
      %p76 = scmp.ne.s32.totalorder %s65, %s68
      %p77 = scmp.eq.s32.totalorder %s18, 1
      %p78 = por %p76, %p77
      %p79 = scmp.ne.s32.totalorder %s68, %s69
      %p80 = scmp.eq.s32.totalorder %s18, 0
      %p81 = por %p79, %p80
      %p82 = scmp.ne.s32.totalorder %s68, %s69
      %p83 = scmp.eq.s32.totalorder %s19, 1
      %p84 = por %p82, %p83
      %p86 = scmp.ne.s32.totalorder %s69, %s85
      %p87 = scmp.eq.s32.totalorder %s19, 0
      %p88 = por %p86, %p87
      %s89 = ssub.s32 %s20, %s32
      %s90 = ssub.s32 %s21, %s28
      %s91 = sor.u32 %s89, %s90
      %p92 = scmp.eq.s32.totalorder %s91, 0
      %s94 = sadd.s32 %s93, 1
      %s95 = scalar_select %p92, %s93, %s94
      %p98 = pneg %p92
      %p99 = scmp.eq.s32.totalorder %s13, 1
      %p100 = por %p98, %p99
      %p101 = scmp.ne.s32.totalorder %s93, %s96
      %p102 = scmp.eq.s32.totalorder %s13, 0
      %p103 = por %p101, %p102
      %p104 = scmp.ne.s32.totalorder %s93, %s96
      %p105 = scmp.eq.s32.totalorder %s18, 1
      %p106 = por %p104, %p105
      %p107 = scmp.ne.s32.totalorder %s96, %s97
      %p108 = scmp.eq.s32.totalorder %s18, 0
      %p109 = por %p107, %p108
      %p110 = scmp.ne.s32.totalorder %s96, %s97
      %p111 = scmp.eq.s32.totalorder %s19, 1
      %p112 = por %p110, %p111
      %p114 = scmp.ne.s32.totalorder %s97, %s113
      %p115 = scmp.eq.s32.totalorder %s19, 0
      %p116 = por %p114, %p115
      %s117 = ssub.s32 %s20, %s32
      %s118 = ssub.s32 %s21, %s28
      %s119 = sor.u32 %s117, %s118
      %p120 = scmp.eq.s32.totalorder %s119, 0
      %s122 = sadd.s32 %s121, 1
      %s123 = scalar_select %p120, %s121, %s122
      %p126 = pneg %p120
      %p127 = scmp.eq.s32.totalorder %s13, 1
      %p128 = por %p126, %p127
      %p129 = scmp.ne.s32.totalorder %s121, %s124
      %p130 = scmp.eq.s32.totalorder %s13, 0
      %p131 = por %p129, %p130
      %p132 = scmp.ne.s32.totalorder %s121, %s124
      %p133 = scmp.eq.s32.totalorder %s18, 1
      %p134 = por %p132, %p133
      %p135 = scmp.ne.s32.totalorder %s124, %s125
      %p136 = scmp.eq.s32.totalorder %s18, 0
      %p137 = por %p135, %p136
      %p138 = scmp.ne.s32.totalorder %s124, %s125
      %p139 = scmp.eq.s32.totalorder %s19, 1
      %p140 = por %p138, %p139
      %p142 = scmp.ne.s32.totalorder %s125, %s141
      %p143 = scmp.eq.s32.totalorder %s19, 0
      %p144 = por %p142, %p143
      %s145 = ssub.s32 %s21, %s28
      %p146 = scmp.eq.s32.totalorder %s145, 0
      %s148 = sadd.s32 %s147, 1
      %s149 = scalar_select %p146, %s147, %s148
      %p152 = pneg %p146
      %p153 = scmp.eq.s32.totalorder %s13, 1
      %p154 = por %p152, %p153
      %p155 = scmp.ne.s32.totalorder %s147, %s150
      %p156 = scmp.eq.s32.totalorder %s13, 0
      %p157 = por %p155, %p156
      %p158 = scmp.ne.s32.totalorder %s147, %s150
      %p159 = scmp.eq.s32.totalorder %s18, 1
      %p160 = por %p158, %p159
      %p161 = scmp.ne.s32.totalorder %s150, %s151
      %p162 = scmp.eq.s32.totalorder %s18, 0
      %p163 = por %p161, %p162
      %p164 = scmp.ne.s32.totalorder %s150, %s151
      %p165 = scmp.eq.s32.totalorder %s19, 1
      %p166 = por %p164, %p165
      %p168 = scmp.ne.s32.totalorder %s151, %s167
      %p169 = scmp.eq.s32.totalorder %s19, 0
      %p170 = por %p168, %p169
      %s171 = ssub.s32 %s20, %s32
      %s172 = ssub.s32 %s21, %s28
      %s173 = sor.u32 %s171, %s172
      %p174 = scmp.eq.s32.totalorder %s173, 0
      %s176 = sadd.s32 %s175, 1
      %s177 = scalar_select %p174, %s175, %s176
      %p180 = pneg %p174
      %p181 = scmp.eq.s32.totalorder %s13, 1
      %p182 = por %p180, %p181
      %p183 = scmp.ne.s32.totalorder %s175, %s178
      %p184 = scmp.eq.s32.totalorder %s13, 0
      %p185 = por %p183, %p184
      %p186 = scmp.ne.s32.totalorder %s175, %s178
      %p187 = scmp.eq.s32.totalorder %s18, 1
      %p188 = por %p186, %p187
      %p189 = scmp.ne.s32.totalorder %s178, %s179
      %p190 = scmp.eq.s32.totalorder %s18, 0
      %p191 = por %p189, %p190
      %p192 = scmp.ne.s32.totalorder %s178, %s179
      %p193 = scmp.eq.s32.totalorder %s19, 1
      %p194 = por %p192, %p193
      %p196 = scmp.ne.s32.totalorder %s179, %s195
      %p197 = scmp.eq.s32.totalorder %s19, 0
      %p198 = por %p196, %p197
      %s199 = ssub.s32 %s20, %s32
      %s200 = ssub.s32 %s21, %s28
      %s201 = sor.u32 %s199, %s200
      %p202 = scmp.eq.s32.totalorder %s201, 0
      %s204 = sadd.s32 %s203, 1
      %s205 = scalar_select %p202, %s203, %s204
      %p208 = pneg %p202
      %p209 = scmp.eq.s32.totalorder %s13, 1
      %p210 = por %p208, %p209
      %p211 = scmp.ne.s32.totalorder %s203, %s206
      %p212 = scmp.eq.s32.totalorder %s13, 0
      %p213 = por %p211, %p212
      %p214 = scmp.ne.s32.totalorder %s203, %s206
      %p215 = scmp.eq.s32.totalorder %s18, 1
      %p216 = por %p214, %p215
      %p217 = scmp.ne.s32.totalorder %s206, %s207
      %p218 = scmp.eq.s32.totalorder %s18, 0
      %p219 = por %p217, %p218
      %p220 = scmp.ne.s32.totalorder %s206, %s207
      %p221 = scmp.eq.s32.totalorder %s19, 1
      %p222 = por %p220, %p221
      %p224 = scmp.ne.s32.totalorder %s207, %s223
      %p225 = scmp.eq.s32.totalorder %s19, 0
      %p226 = por %p224, %p225
      %p227 = scmp.le.s32.totalorder 1, %s13
      %p228 = scmp.lt.s32.totalorder %s13, 3
      %p229 = pnand %p227, %p228
      %p230 = pneg %p229
      // Predicated region
      $region9: #{downblock.2} parent=5 // pred_check
        _
      $region10: #{downblock.2} parent=5 // pred_check_branch
        %232 = sbr.rel (%p229) target = $region12
      $region11: #{downblock.2} parent=5 // pred_region
        %s233 = ssub.s32 %s13, 1
        // Predicated region
        $region13: #{downblock.2} parent=11 // pred_check
          %p234 = pneg %p163
        $region14: #{downblock.2} parent=11 // pred_check_branch
          %236 = sbr.rel (%p234) target = $region16
        $region15: #{downblock.2} parent=11 // pred_region
          %p237 = scmp.lt.s32.totalorder %s23, 0
          %s238 = scalar_select %p237, %s23, 0
          %s239 = smul.addr %s238, 8
          %s240 = scalar_lea.vmem %s4, %s239
        $region16: #{downblock.2} parent=11 // pred_fallthru
          _
      $region12: #{downblock.2} parent=5 // pred_fallthru
        _
      %p241 = scmp.lt.s32.totalorder %s13, 2
      // Predicated region
      $region17: #{downblock.2} parent=5 // pred_check
        %p242 = pneg %p241
      $region18: #{downblock.2} parent=5 // pred_check_branch
        %244 = sbr.rel (%p242) target = $region20
      $region19: #{downblock.2} parent=5 // pred_region
        // Predicated region
        $region21: #{downblock.2} parent=19 // pred_check
          %p245 = pneg %p47
        $region22: #{downblock.2} parent=19 // pred_check_branch
          %247 = sbr.rel (%p245) target = $region24
        $region23: #{downblock.2} parent=19 // pred_region
          %s248 = sand.u32 %s37, 1
          %s249 = sand.u32 %s37, 1
          %s250 = smul.addr %s249, 144
          %s251 = scalar_lea.vmem [#allocation2], %s250
          %s252 = smul.addr %s20, 72
          %s253 = sadd.s32 %s21, %s252
          %s254 = smul.addr %s253, 8
          %s255 = scalar_lea.vmem %s0, %s254
          // Predicated region
          $region25: #{downblock.2} parent=23 // pred_check
            _
          $region26: #{downblock.2} parent=23 // pred_check_branch
            %257 = sbr.rel (0) target = $region28
          $region27: #{downblock.2} parent=23 // pred_region
            // Predicated region
            $region29: #{downblock.2} parent=27 // pred_check
              _
            $region30: #{downblock.2} parent=27 // pred_check_branch
              %259 = sbr.rel (0) target = $region32
            $region31: #{downblock.2} parent=27 // pred_region
              // Predicated region
              $region44: #{downblock.2} parent=31 // pred_check
                _
              $region45: #{downblock.2} parent=31 // pred_check_branch
                %308 = sbr.rel (0) target = $region47
              $region46: #{downblock.2} parent=31 // pred_region
                loop: start=0, step=1, limit=1
                $region48: #{downblock.2} parent=46 // loop_pre_header
                  _
                $region49: #{downblock.2} parent=46 // loop_header
                  %s310 = sphi 0, %s314
                  %p311 = scmp.ge.s32.totalorder %s310, 1
                  %s315 = sphi %s255, %s255
                  %s316 = sphi %s251, %s251
                $region50: #{downblock.2} parent=46 // loop_header_branch
                  %313 = sbr.rel (%p311) target = $region54
                $region51: #{downblock.2} parent=46 // loop_body
                  %v317 = vld [vmem:[%s315] sm:$0xff]
                  %318 = vst [vmem:[%s316] sm:$0xff] %v317
                  %v319 = vld [vmem:[%s315 + $0x8] sm:$0xff]
                  %320 = vst [vmem:[%s316 + $0x8] sm:$0xff] %v319
                  %v321 = vld [vmem:[%s315 + $0x40] sm:$0xff]
                  %322 = vst [vmem:[%s316 + $0x10] sm:$0xff] %v321
                  %v323 = vld [vmem:[%s315 + $0x48] sm:$0xff]
                  %324 = vst [vmem:[%s316 + $0x18] sm:$0xff] %v323
                  %v325 = vld [vmem:[%s315 + $0x80] sm:$0xff]
                  %326 = vst [vmem:[%s316 + $0x20] sm:$0xff] %v325
                  %v327 = vld [vmem:[%s315 + $0x88] sm:$0xff]
                  %328 = vst [vmem:[%s316 + $0x28] sm:$0xff] %v327
                  %v329 = vld [vmem:[%s315 + $0xc0] sm:$0xff]
                  %330 = vst [vmem:[%s316 + $0x30] sm:$0xff] %v329
                  %v331 = vld [vmem:[%s315 + $0xc8] sm:$0xff]
                  %332 = vst [vmem:[%s316 + $0x38] sm:$0xff] %v331
                  %v333 = vld [vmem:[%s315 + $0x100] sm:$0xff]
                  %334 = vst [vmem:[%s316 + $0x40] sm:$0xff] %v333
                  %v335 = vld [vmem:[%s315 + $0x108] sm:$0xff]
                  %336 = vst [vmem:[%s316 + $0x48] sm:$0xff] %v335
                  %v337 = vld [vmem:[%s315 + $0x140] sm:$0xff]
                  %338 = vst [vmem:[%s316 + $0x50] sm:$0xff] %v337
                  %v339 = vld [vmem:[%s315 + $0x148] sm:$0xff]
                  %340 = vst [vmem:[%s316 + $0x58] sm:$0xff] %v339
                  %v341 = vld [vmem:[%s315 + $0x180] sm:$0xff]
                  %342 = vst [vmem:[%s316 + $0x60] sm:$0xff] %v341
                  %v343 = vld [vmem:[%s315 + $0x188] sm:$0xff]
                  %344 = vst [vmem:[%s316 + $0x68] sm:$0xff] %v343
                  %v345 = vld [vmem:[%s315 + $0x1c0] sm:$0xff]
                  %346 = vst [vmem:[%s316 + $0x70] sm:$0xff] %v345
                  %v347 = vld [vmem:[%s315 + $0x1c8] sm:$0xff]
                  %348 = vst [vmem:[%s316 + $0x78] sm:$0xff] %v347
                  %v349 = vld [vmem:[%s315 + $0x200] sm:$0xff]
                  %350 = vst [vmem:[%s316 + $0x80] sm:$0xff] %v349
                  %v351 = vld [vmem:[%s315 + $0x208] sm:$0xff]
                  %352 = vst [vmem:[%s316 + $0x88] sm:$0xff] %v351
                $region52: #{downblock.2} parent=46 // loop_footer
                  %s314 = sadd.s32 1, %s310
                $region53: #{downblock.2} parent=46 // loop_footer_branch
                  %309 = sbr.rel target = $region49
                $region54: #{downblock.2} parent=46 // loop_exit
                  _
              $region47: #{downblock.2} parent=31 // pred_fallthru
                _
              // Predicated region
              $region55: #{downblock.2} parent=31 // pred_check
                _
              $region56: #{downblock.2} parent=31 // pred_check_branch
                %354 = sbr.rel target = $region58
              $region57: #{downblock.2} parent=31 // pred_region
                _
              $region58: #{downblock.2} parent=31 // pred_fallthru
                _
            $region32: #{downblock.2} parent=27 // pred_fallthru
              _
            // Predicated region
            $region33: #{downblock.2} parent=27 // pred_check
              _
            $region34: #{downblock.2} parent=27 // pred_check_branch
              %261 = sbr.rel target = $region36
            $region35: #{downblock.2} parent=27 // pred_region
              loop: start=0, step=1, limit=1
              $region37: #{downblock.2} parent=35 // loop_pre_header
                _
              $region38: #{downblock.2} parent=35 // loop_header
                %s264 = sphi 0, %s268
                %p265 = scmp.ge.s32.totalorder %s264, 1
                %s269 = sphi %s255, %s255
                %s270 = sphi %s251, %s251
              $region39: #{downblock.2} parent=35 // loop_header_branch
                %267 = sbr.rel (%p265) target = $region43
              $region40: #{downblock.2} parent=35 // loop_body
                %v271 = vld [vmem:[%s269] sm:$0xff]
                %272 = vst [vmem:[%s270] sm:$0xff] %v271
                %v273 = vld [vmem:[%s269 + $0x8] sm:$0xff]
                %274 = vst [vmem:[%s270 + $0x8] sm:$0xff] %v273
                %v275 = vld [vmem:[%s269 + $0x40] sm:$0xff]
                %276 = vst [vmem:[%s270 + $0x10] sm:$0xff] %v275
                %v277 = vld [vmem:[%s269 + $0x48] sm:$0xff]
                %278 = vst [vmem:[%s270 + $0x18] sm:$0xff] %v277
                %v279 = vld [vmem:[%s269 + $0x80] sm:$0xff]
                %280 = vst [vmem:[%s270 + $0x20] sm:$0xff] %v279
                %v281 = vld [vmem:[%s269 + $0x88] sm:$0xff]
                %282 = vst [vmem:[%s270 + $0x28] sm:$0xff] %v281
                %v283 = vld [vmem:[%s269 + $0xc0] sm:$0xff]
                %284 = vst [vmem:[%s270 + $0x30] sm:$0xff] %v283
                %v285 = vld [vmem:[%s269 + $0xc8] sm:$0xff]
                %286 = vst [vmem:[%s270 + $0x38] sm:$0xff] %v285
                %v287 = vld [vmem:[%s269 + $0x100] sm:$0xff]
                %288 = vst [vmem:[%s270 + $0x40] sm:$0xff] %v287
                %v289 = vld [vmem:[%s269 + $0x108] sm:$0xff]
                %290 = vst [vmem:[%s270 + $0x48] sm:$0xff] %v289
                %v291 = vld [vmem:[%s269 + $0x140] sm:$0xff]
                %292 = vst [vmem:[%s270 + $0x50] sm:$0xff] %v291
                %v293 = vld [vmem:[%s269 + $0x148] sm:$0xff]
                %294 = vst [vmem:[%s270 + $0x58] sm:$0xff] %v293
                %v295 = vld [vmem:[%s269 + $0x180] sm:$0xff]
                %296 = vst [vmem:[%s270 + $0x60] sm:$0xff] %v295
                %v297 = vld [vmem:[%s269 + $0x188] sm:$0xff]
                %298 = vst [vmem:[%s270 + $0x68] sm:$0xff] %v297
                %v299 = vld [vmem:[%s269 + $0x1c0] sm:$0xff]
                %300 = vst [vmem:[%s270 + $0x70] sm:$0xff] %v299
                %v301 = vld [vmem:[%s269 + $0x1c8] sm:$0xff]
                %302 = vst [vmem:[%s270 + $0x78] sm:$0xff] %v301
                %v303 = vld [vmem:[%s269 + $0x200] sm:$0xff]
                %304 = vst [vmem:[%s270 + $0x80] sm:$0xff] %v303
                %v305 = vld [vmem:[%s269 + $0x208] sm:$0xff]
                %306 = vst [vmem:[%s270 + $0x88] sm:$0xff] %v305
              $region41: #{downblock.2} parent=35 // loop_footer
                %s268 = sadd.s32 1, %s264
              $region42: #{downblock.2} parent=35 // loop_footer_branch
                %263 = sbr.rel target = $region38
              $region43: #{downblock.2} parent=35 // loop_exit
                _
            $region36: #{downblock.2} parent=27 // pred_fallthru
              _
          $region28: #{downblock.2} parent=23 // pred_fallthru
            _
          %355 = vnop
        $region24: #{downblock.2} parent=19 // pred_fallthru
          _
        // Predicated region
        $region59: #{downblock.2} parent=19 // pred_check
          %p356 = pneg %p75
        $region60: #{downblock.2} parent=19 // pred_check_branch
          %358 = sbr.rel (%p356) target = $region62
        $region61: #{downblock.2} parent=19 // pred_region
          %s359 = sand.u32 %s65, 1
          %s360 = sand.u32 %s65, 1
          %s361 = smul.addr %s360, 144
          %s362 = scalar_lea.vmem [#allocation3], %s361
          %s363 = sadd.s32 %s21, 2
          %s364 = smul.addr %s20, 72
          %s365 = sadd.s32 %s363, %s364
          %s366 = smul.addr %s365, 8
          %s367 = scalar_lea.vmem %s1, %s366
          // Predicated region
          $region63: #{downblock.2} parent=61 // pred_check
            _
          $region64: #{downblock.2} parent=61 // pred_check_branch
            %369 = sbr.rel (0) target = $region66
          $region65: #{downblock.2} parent=61 // pred_region
            // Predicated region
            $region67: #{downblock.2} parent=65 // pred_check
              _
            $region68: #{downblock.2} parent=65 // pred_check_branch
              %371 = sbr.rel (0) target = $region70
            $region69: #{downblock.2} parent=65 // pred_region
              // Predicated region
              $region82: #{downblock.2} parent=69 // pred_check
                _
              $region83: #{downblock.2} parent=69 // pred_check_branch
                %420 = sbr.rel (0) target = $region85
              $region84: #{downblock.2} parent=69 // pred_region
                loop: start=0, step=1, limit=1
                $region86: #{downblock.2} parent=84 // loop_pre_header
                  _
                $region87: #{downblock.2} parent=84 // loop_header
                  %s422 = sphi 0, %s426
                  %p423 = scmp.ge.s32.totalorder %s422, 1
                  %s427 = sphi %s367, %s367
                  %s428 = sphi %s362, %s362
                $region88: #{downblock.2} parent=84 // loop_header_branch
                  %425 = sbr.rel (%p423) target = $region92
                $region89: #{downblock.2} parent=84 // loop_body
                  %v429 = vld [vmem:[%s427] sm:$0xff]
                  %430 = vst [vmem:[%s428] sm:$0xff] %v429
                  %v431 = vld [vmem:[%s427 + $0x8] sm:$0xff]
                  %432 = vst [vmem:[%s428 + $0x8] sm:$0xff] %v431
                  %v433 = vld [vmem:[%s427 + $0x40] sm:$0xff]
                  %434 = vst [vmem:[%s428 + $0x10] sm:$0xff] %v433
                  %v435 = vld [vmem:[%s427 + $0x48] sm:$0xff]
                  %436 = vst [vmem:[%s428 + $0x18] sm:$0xff] %v435
                  %v437 = vld [vmem:[%s427 + $0x80] sm:$0xff]
                  %438 = vst [vmem:[%s428 + $0x20] sm:$0xff] %v437
                  %v439 = vld [vmem:[%s427 + $0x88] sm:$0xff]
                  %440 = vst [vmem:[%s428 + $0x28] sm:$0xff] %v439
                  %v441 = vld [vmem:[%s427 + $0xc0] sm:$0xff]
                  %442 = vst [vmem:[%s428 + $0x30] sm:$0xff] %v441
                  %v443 = vld [vmem:[%s427 + $0xc8] sm:$0xff]
                  %444 = vst [vmem:[%s428 + $0x38] sm:$0xff] %v443
                  %v445 = vld [vmem:[%s427 + $0x100] sm:$0xff]
                  %446 = vst [vmem:[%s428 + $0x40] sm:$0xff] %v445
                  %v447 = vld [vmem:[%s427 + $0x108] sm:$0xff]
                  %448 = vst [vmem:[%s428 + $0x48] sm:$0xff] %v447
                  %v449 = vld [vmem:[%s427 + $0x140] sm:$0xff]
                  %450 = vst [vmem:[%s428 + $0x50] sm:$0xff] %v449
                  %v451 = vld [vmem:[%s427 + $0x148] sm:$0xff]
                  %452 = vst [vmem:[%s428 + $0x58] sm:$0xff] %v451
                  %v453 = vld [vmem:[%s427 + $0x180] sm:$0xff]
                  %454 = vst [vmem:[%s428 + $0x60] sm:$0xff] %v453
                  %v455 = vld [vmem:[%s427 + $0x188] sm:$0xff]
                  %456 = vst [vmem:[%s428 + $0x68] sm:$0xff] %v455
                  %v457 = vld [vmem:[%s427 + $0x1c0] sm:$0xff]
                  %458 = vst [vmem:[%s428 + $0x70] sm:$0xff] %v457
                  %v459 = vld [vmem:[%s427 + $0x1c8] sm:$0xff]
                  %460 = vst [vmem:[%s428 + $0x78] sm:$0xff] %v459
                  %v461 = vld [vmem:[%s427 + $0x200] sm:$0xff]
                  %462 = vst [vmem:[%s428 + $0x80] sm:$0xff] %v461
                  %v463 = vld [vmem:[%s427 + $0x208] sm:$0xff]
                  %464 = vst [vmem:[%s428 + $0x88] sm:$0xff] %v463
                $region90: #{downblock.2} parent=84 // loop_footer
                  %s426 = sadd.s32 1, %s422
                $region91: #{downblock.2} parent=84 // loop_footer_branch
                  %421 = sbr.rel target = $region87
                $region92: #{downblock.2} parent=84 // loop_exit
                  _
              $region85: #{downblock.2} parent=69 // pred_fallthru
                _
              // Predicated region
              $region93: #{downblock.2} parent=69 // pred_check
                _
              $region94: #{downblock.2} parent=69 // pred_check_branch
                %466 = sbr.rel target = $region96
              $region95: #{downblock.2} parent=69 // pred_region
                _
              $region96: #{downblock.2} parent=69 // pred_fallthru
                _
            $region70: #{downblock.2} parent=65 // pred_fallthru
              _
            // Predicated region
            $region71: #{downblock.2} parent=65 // pred_check
              _
            $region72: #{downblock.2} parent=65 // pred_check_branch
              %373 = sbr.rel target = $region74
            $region73: #{downblock.2} parent=65 // pred_region
              loop: start=0, step=1, limit=1
              $region75: #{downblock.2} parent=73 // loop_pre_header
                _
              $region76: #{downblock.2} parent=73 // loop_header
                %s376 = sphi 0, %s380
                %p377 = scmp.ge.s32.totalorder %s376, 1
                %s381 = sphi %s367, %s367
                %s382 = sphi %s362, %s362
              $region77: #{downblock.2} parent=73 // loop_header_branch
                %379 = sbr.rel (%p377) target = $region81
              $region78: #{downblock.2} parent=73 // loop_body
                %v383 = vld [vmem:[%s381] sm:$0xff]
                %384 = vst [vmem:[%s382] sm:$0xff] %v383
                %v385 = vld [vmem:[%s381 + $0x8] sm:$0xff]
                %386 = vst [vmem:[%s382 + $0x8] sm:$0xff] %v385
                %v387 = vld [vmem:[%s381 + $0x40] sm:$0xff]
                %388 = vst [vmem:[%s382 + $0x10] sm:$0xff] %v387
                %v389 = vld [vmem:[%s381 + $0x48] sm:$0xff]
                %390 = vst [vmem:[%s382 + $0x18] sm:$0xff] %v389
                %v391 = vld [vmem:[%s381 + $0x80] sm:$0xff]
                %392 = vst [vmem:[%s382 + $0x20] sm:$0xff] %v391
                %v393 = vld [vmem:[%s381 + $0x88] sm:$0xff]
                %394 = vst [vmem:[%s382 + $0x28] sm:$0xff] %v393
                %v395 = vld [vmem:[%s381 + $0xc0] sm:$0xff]
                %396 = vst [vmem:[%s382 + $0x30] sm:$0xff] %v395
                %v397 = vld [vmem:[%s381 + $0xc8] sm:$0xff]
                %398 = vst [vmem:[%s382 + $0x38] sm:$0xff] %v397
                %v399 = vld [vmem:[%s381 + $0x100] sm:$0xff]
                %400 = vst [vmem:[%s382 + $0x40] sm:$0xff] %v399
                %v401 = vld [vmem:[%s381 + $0x108] sm:$0xff]
                %402 = vst [vmem:[%s382 + $0x48] sm:$0xff] %v401
                %v403 = vld [vmem:[%s381 + $0x140] sm:$0xff]
                %404 = vst [vmem:[%s382 + $0x50] sm:$0xff] %v403
                %v405 = vld [vmem:[%s381 + $0x148] sm:$0xff]
                %406 = vst [vmem:[%s382 + $0x58] sm:$0xff] %v405
                %v407 = vld [vmem:[%s381 + $0x180] sm:$0xff]
                %408 = vst [vmem:[%s382 + $0x60] sm:$0xff] %v407
                %v409 = vld [vmem:[%s381 + $0x188] sm:$0xff]
                %410 = vst [vmem:[%s382 + $0x68] sm:$0xff] %v409
                %v411 = vld [vmem:[%s381 + $0x1c0] sm:$0xff]
                %412 = vst [vmem:[%s382 + $0x70] sm:$0xff] %v411
                %v413 = vld [vmem:[%s381 + $0x1c8] sm:$0xff]
                %414 = vst [vmem:[%s382 + $0x78] sm:$0xff] %v413
                %v415 = vld [vmem:[%s381 + $0x200] sm:$0xff]
                %416 = vst [vmem:[%s382 + $0x80] sm:$0xff] %v415
                %v417 = vld [vmem:[%s381 + $0x208] sm:$0xff]
                %418 = vst [vmem:[%s382 + $0x88] sm:$0xff] %v417
              $region79: #{downblock.2} parent=73 // loop_footer
                %s380 = sadd.s32 1, %s376
              $region80: #{downblock.2} parent=73 // loop_footer_branch
                %375 = sbr.rel target = $region76
              $region81: #{downblock.2} parent=73 // loop_exit
                _
            $region74: #{downblock.2} parent=65 // pred_fallthru
              _
          $region66: #{downblock.2} parent=61 // pred_fallthru
            _
          %467 = vnop
        $region62: #{downblock.2} parent=19 // pred_fallthru
          _
        // Predicated region
        $region97: #{downblock.2} parent=19 // pred_check
          %p468 = pneg %p103
        $region98: #{downblock.2} parent=19 // pred_check_branch
          %470 = sbr.rel (%p468) target = $region100
        $region99: #{downblock.2} parent=19 // pred_region
          %s471 = sand.u32 %s93, 1
          %s472 = sand.u32 %s93, 1
          %s473 = smul.addr %s472, 144
          %s474 = scalar_lea.vmem [#allocation4], %s473
          %s475 = sadd.s32 %s21, 4
          %s476 = smul.addr %s20, 72
          %s477 = sadd.s32 %s475, %s476
          %s478 = smul.addr %s477, 8
          %s479 = scalar_lea.vmem %s2, %s478
          // Predicated region
          $region101: #{downblock.2} parent=99 // pred_check
            _
          $region102: #{downblock.2} parent=99 // pred_check_branch
            %481 = sbr.rel (0) target = $region104
          $region103: #{downblock.2} parent=99 // pred_region
            // Predicated region
            $region105: #{downblock.2} parent=103 // pred_check
              _
            $region106: #{downblock.2} parent=103 // pred_check_branch
              %483 = sbr.rel (0) target = $region108
            $region107: #{downblock.2} parent=103 // pred_region
              // Predicated region
              $region120: #{downblock.2} parent=107 // pred_check
                _
              $region121: #{downblock.2} parent=107 // pred_check_branch
                %532 = sbr.rel (0) target = $region123
              $region122: #{downblock.2} parent=107 // pred_region
                loop: start=0, step=1, limit=1
                $region124: #{downblock.2} parent=122 // loop_pre_header
                  _
                $region125: #{downblock.2} parent=122 // loop_header
                  %s534 = sphi 0, %s538
                  %p535 = scmp.ge.s32.totalorder %s534, 1
                  %s539 = sphi %s479, %s479
                  %s540 = sphi %s474, %s474
                $region126: #{downblock.2} parent=122 // loop_header_branch
                  %537 = sbr.rel (%p535) target = $region130
                $region127: #{downblock.2} parent=122 // loop_body
                  %v541 = vld [vmem:[%s539] sm:$0xff]
                  %542 = vst [vmem:[%s540] sm:$0xff] %v541
                  %v543 = vld [vmem:[%s539 + $0x8] sm:$0xff]
                  %544 = vst [vmem:[%s540 + $0x8] sm:$0xff] %v543
                  %v545 = vld [vmem:[%s539 + $0x40] sm:$0xff]
                  %546 = vst [vmem:[%s540 + $0x10] sm:$0xff] %v545
                  %v547 = vld [vmem:[%s539 + $0x48] sm:$0xff]
                  %548 = vst [vmem:[%s540 + $0x18] sm:$0xff] %v547
                  %v549 = vld [vmem:[%s539 + $0x80] sm:$0xff]
                  %550 = vst [vmem:[%s540 + $0x20] sm:$0xff] %v549
                  %v551 = vld [vmem:[%s539 + $0x88] sm:$0xff]
                  %552 = vst [vmem:[%s540 + $0x28] sm:$0xff] %v551
                  %v553 = vld [vmem:[%s539 + $0xc0] sm:$0xff]
                  %554 = vst [vmem:[%s540 + $0x30] sm:$0xff] %v553
                  %v555 = vld [vmem:[%s539 + $0xc8] sm:$0xff]
                  %556 = vst [vmem:[%s540 + $0x38] sm:$0xff] %v555
                  %v557 = vld [vmem:[%s539 + $0x100] sm:$0xff]
                  %558 = vst [vmem:[%s540 + $0x40] sm:$0xff] %v557
                  %v559 = vld [vmem:[%s539 + $0x108] sm:$0xff]
                  %560 = vst [vmem:[%s540 + $0x48] sm:$0xff] %v559
                  %v561 = vld [vmem:[%s539 + $0x140] sm:$0xff]
                  %562 = vst [vmem:[%s540 + $0x50] sm:$0xff] %v561
                  %v563 = vld [vmem:[%s539 + $0x148] sm:$0xff]
                  %564 = vst [vmem:[%s540 + $0x58] sm:$0xff] %v563
                  %v565 = vld [vmem:[%s539 + $0x180] sm:$0xff]
                  %566 = vst [vmem:[%s540 + $0x60] sm:$0xff] %v565
                  %v567 = vld [vmem:[%s539 + $0x188] sm:$0xff]
                  %568 = vst [vmem:[%s540 + $0x68] sm:$0xff] %v567
                  %v569 = vld [vmem:[%s539 + $0x1c0] sm:$0xff]
                  %570 = vst [vmem:[%s540 + $0x70] sm:$0xff] %v569
                  %v571 = vld [vmem:[%s539 + $0x1c8] sm:$0xff]
                  %572 = vst [vmem:[%s540 + $0x78] sm:$0xff] %v571
                  %v573 = vld [vmem:[%s539 + $0x200] sm:$0xff]
                  %574 = vst [vmem:[%s540 + $0x80] sm:$0xff] %v573
                  %v575 = vld [vmem:[%s539 + $0x208] sm:$0xff]
                  %576 = vst [vmem:[%s540 + $0x88] sm:$0xff] %v575
                $region128: #{downblock.2} parent=122 // loop_footer
                  %s538 = sadd.s32 1, %s534
                $region129: #{downblock.2} parent=122 // loop_footer_branch
                  %533 = sbr.rel target = $region125
                $region130: #{downblock.2} parent=122 // loop_exit
                  _
              $region123: #{downblock.2} parent=107 // pred_fallthru
                _
              // Predicated region
              $region131: #{downblock.2} parent=107 // pred_check
                _
              $region132: #{downblock.2} parent=107 // pred_check_branch
                %578 = sbr.rel target = $region134
              $region133: #{downblock.2} parent=107 // pred_region
                _
              $region134: #{downblock.2} parent=107 // pred_fallthru
                _
            $region108: #{downblock.2} parent=103 // pred_fallthru
              _
            // Predicated region
            $region109: #{downblock.2} parent=103 // pred_check
              _
            $region110: #{downblock.2} parent=103 // pred_check_branch
              %485 = sbr.rel target = $region112
            $region111: #{downblock.2} parent=103 // pred_region
              loop: start=0, step=1, limit=1
              $region113: #{downblock.2} parent=111 // loop_pre_header
                _
              $region114: #{downblock.2} parent=111 // loop_header
                %s488 = sphi 0, %s492
                %p489 = scmp.ge.s32.totalorder %s488, 1
                %s493 = sphi %s479, %s479
                %s494 = sphi %s474, %s474
              $region115: #{downblock.2} parent=111 // loop_header_branch
                %491 = sbr.rel (%p489) target = $region119
              $region116: #{downblock.2} parent=111 // loop_body
                %v495 = vld [vmem:[%s493] sm:$0xff]
                %496 = vst [vmem:[%s494] sm:$0xff] %v495
                %v497 = vld [vmem:[%s493 + $0x8] sm:$0xff]
                %498 = vst [vmem:[%s494 + $0x8] sm:$0xff] %v497
                %v499 = vld [vmem:[%s493 + $0x40] sm:$0xff]
                %500 = vst [vmem:[%s494 + $0x10] sm:$0xff] %v499
                %v501 = vld [vmem:[%s493 + $0x48] sm:$0xff]
                %502 = vst [vmem:[%s494 + $0x18] sm:$0xff] %v501
                %v503 = vld [vmem:[%s493 + $0x80] sm:$0xff]
                %504 = vst [vmem:[%s494 + $0x20] sm:$0xff] %v503
                %v505 = vld [vmem:[%s493 + $0x88] sm:$0xff]
                %506 = vst [vmem:[%s494 + $0x28] sm:$0xff] %v505
                %v507 = vld [vmem:[%s493 + $0xc0] sm:$0xff]
                %508 = vst [vmem:[%s494 + $0x30] sm:$0xff] %v507
                %v509 = vld [vmem:[%s493 + $0xc8] sm:$0xff]
                %510 = vst [vmem:[%s494 + $0x38] sm:$0xff] %v509
                %v511 = vld [vmem:[%s493 + $0x100] sm:$0xff]
                %512 = vst [vmem:[%s494 + $0x40] sm:$0xff] %v511
                %v513 = vld [vmem:[%s493 + $0x108] sm:$0xff]
                %514 = vst [vmem:[%s494 + $0x48] sm:$0xff] %v513
                %v515 = vld [vmem:[%s493 + $0x140] sm:$0xff]
                %516 = vst [vmem:[%s494 + $0x50] sm:$0xff] %v515
                %v517 = vld [vmem:[%s493 + $0x148] sm:$0xff]
                %518 = vst [vmem:[%s494 + $0x58] sm:$0xff] %v517
                %v519 = vld [vmem:[%s493 + $0x180] sm:$0xff]
                %520 = vst [vmem:[%s494 + $0x60] sm:$0xff] %v519
                %v521 = vld [vmem:[%s493 + $0x188] sm:$0xff]
                %522 = vst [vmem:[%s494 + $0x68] sm:$0xff] %v521
                %v523 = vld [vmem:[%s493 + $0x1c0] sm:$0xff]
                %524 = vst [vmem:[%s494 + $0x70] sm:$0xff] %v523
                %v525 = vld [vmem:[%s493 + $0x1c8] sm:$0xff]
                %526 = vst [vmem:[%s494 + $0x78] sm:$0xff] %v525
                %v527 = vld [vmem:[%s493 + $0x200] sm:$0xff]
                %528 = vst [vmem:[%s494 + $0x80] sm:$0xff] %v527
                %v529 = vld [vmem:[%s493 + $0x208] sm:$0xff]
                %530 = vst [vmem:[%s494 + $0x88] sm:$0xff] %v529
              $region117: #{downblock.2} parent=111 // loop_footer
                %s492 = sadd.s32 1, %s488
              $region118: #{downblock.2} parent=111 // loop_footer_branch
                %487 = sbr.rel target = $region114
              $region119: #{downblock.2} parent=111 // loop_exit
                _
            $region112: #{downblock.2} parent=103 // pred_fallthru
              _
          $region104: #{downblock.2} parent=99 // pred_fallthru
            _
          %579 = vnop
        $region100: #{downblock.2} parent=19 // pred_fallthru
          _
        // Predicated region
        $region135: #{downblock.2} parent=19 // pred_check
          %p580 = pneg %p131
        $region136: #{downblock.2} parent=19 // pred_check_branch
          %582 = sbr.rel (%p580) target = $region138
        $region137: #{downblock.2} parent=19 // pred_region
          %s583 = sand.u32 %s121, 1
          %s584 = sand.u32 %s121, 1
          %s585 = smul.addr %s584, 144
          %s586 = scalar_lea.vmem [#allocation5], %s585
          %s587 = sadd.s32 %s21, 2
          %s588 = sadd.s32 %s587, 4
          %s589 = smul.addr %s20, 72
          %s590 = sadd.s32 %s588, %s589
          %s591 = smul.addr %s590, 8
          %s592 = scalar_lea.vmem %s3, %s591
          // Predicated region
          $region139: #{downblock.2} parent=137 // pred_check
            _
          $region140: #{downblock.2} parent=137 // pred_check_branch
            %594 = sbr.rel (0) target = $region142
          $region141: #{downblock.2} parent=137 // pred_region
            // Predicated region
            $region143: #{downblock.2} parent=141 // pred_check
              _
            $region144: #{downblock.2} parent=141 // pred_check_branch
              %596 = sbr.rel (0) target = $region146
            $region145: #{downblock.2} parent=141 // pred_region
              // Predicated region
              $region158: #{downblock.2} parent=145 // pred_check
                _
              $region159: #{downblock.2} parent=145 // pred_check_branch
                %645 = sbr.rel (0) target = $region161
              $region160: #{downblock.2} parent=145 // pred_region
                loop: start=0, step=1, limit=1
                $region162: #{downblock.2} parent=160 // loop_pre_header
                  _
                $region163: #{downblock.2} parent=160 // loop_header
                  %s647 = sphi 0, %s651
                  %p648 = scmp.ge.s32.totalorder %s647, 1
                  %s652 = sphi %s592, %s592
                  %s653 = sphi %s586, %s586
                $region164: #{downblock.2} parent=160 // loop_header_branch
                  %650 = sbr.rel (%p648) target = $region168
                $region165: #{downblock.2} parent=160 // loop_body
                  %v654 = vld [vmem:[%s652] sm:$0xff]
                  %655 = vst [vmem:[%s653] sm:$0xff] %v654
                  %v656 = vld [vmem:[%s652 + $0x8] sm:$0xff]
                  %657 = vst [vmem:[%s653 + $0x8] sm:$0xff] %v656
                  %v658 = vld [vmem:[%s652 + $0x40] sm:$0xff]
                  %659 = vst [vmem:[%s653 + $0x10] sm:$0xff] %v658
                  %v660 = vld [vmem:[%s652 + $0x48] sm:$0xff]
                  %661 = vst [vmem:[%s653 + $0x18] sm:$0xff] %v660
                  %v662 = vld [vmem:[%s652 + $0x80] sm:$0xff]
                  %663 = vst [vmem:[%s653 + $0x20] sm:$0xff] %v662
                  %v664 = vld [vmem:[%s652 + $0x88] sm:$0xff]
                  %665 = vst [vmem:[%s653 + $0x28] sm:$0xff] %v664
                  %v666 = vld [vmem:[%s652 + $0xc0] sm:$0xff]
                  %667 = vst [vmem:[%s653 + $0x30] sm:$0xff] %v666
                  %v668 = vld [vmem:[%s652 + $0xc8] sm:$0xff]
                  %669 = vst [vmem:[%s653 + $0x38] sm:$0xff] %v668
                  %v670 = vld [vmem:[%s652 + $0x100] sm:$0xff]
                  %671 = vst [vmem:[%s653 + $0x40] sm:$0xff] %v670
                  %v672 = vld [vmem:[%s652 + $0x108] sm:$0xff]
                  %673 = vst [vmem:[%s653 + $0x48] sm:$0xff] %v672
                  %v674 = vld [vmem:[%s652 + $0x140] sm:$0xff]
                  %675 = vst [vmem:[%s653 + $0x50] sm:$0xff] %v674
                  %v676 = vld [vmem:[%s652 + $0x148] sm:$0xff]
                  %677 = vst [vmem:[%s653 + $0x58] sm:$0xff] %v676
                  %v678 = vld [vmem:[%s652 + $0x180] sm:$0xff]
                  %679 = vst [vmem:[%s653 + $0x60] sm:$0xff] %v678
                  %v680 = vld [vmem:[%s652 + $0x188] sm:$0xff]
                  %681 = vst [vmem:[%s653 + $0x68] sm:$0xff] %v680
                  %v682 = vld [vmem:[%s652 + $0x1c0] sm:$0xff]
                  %683 = vst [vmem:[%s653 + $0x70] sm:$0xff] %v682
                  %v684 = vld [vmem:[%s652 + $0x1c8] sm:$0xff]
                  %685 = vst [vmem:[%s653 + $0x78] sm:$0xff] %v684
                  %v686 = vld [vmem:[%s652 + $0x200] sm:$0xff]
                  %687 = vst [vmem:[%s653 + $0x80] sm:$0xff] %v686
                  %v688 = vld [vmem:[%s652 + $0x208] sm:$0xff]
                  %689 = vst [vmem:[%s653 + $0x88] sm:$0xff] %v688
                $region166: #{downblock.2} parent=160 // loop_footer
                  %s651 = sadd.s32 1, %s647
                $region167: #{downblock.2} parent=160 // loop_footer_branch
                  %646 = sbr.rel target = $region163
                $region168: #{downblock.2} parent=160 // loop_exit
                  _
              $region161: #{downblock.2} parent=145 // pred_fallthru
                _
              // Predicated region
              $region169: #{downblock.2} parent=145 // pred_check
                _
              $region170: #{downblock.2} parent=145 // pred_check_branch
                %691 = sbr.rel target = $region172
              $region171: #{downblock.2} parent=145 // pred_region
                _
              $region172: #{downblock.2} parent=145 // pred_fallthru
                _
            $region146: #{downblock.2} parent=141 // pred_fallthru
              _
            // Predicated region
            $region147: #{downblock.2} parent=141 // pred_check
              _
            $region148: #{downblock.2} parent=141 // pred_check_branch
              %598 = sbr.rel target = $region150
            $region149: #{downblock.2} parent=141 // pred_region
              loop: start=0, step=1, limit=1
              $region151: #{downblock.2} parent=149 // loop_pre_header
                _
              $region152: #{downblock.2} parent=149 // loop_header
                %s601 = sphi 0, %s605
                %p602 = scmp.ge.s32.totalorder %s601, 1
                %s606 = sphi %s592, %s592
                %s607 = sphi %s586, %s586
              $region153: #{downblock.2} parent=149 // loop_header_branch
                %604 = sbr.rel (%p602) target = $region157
              $region154: #{downblock.2} parent=149 // loop_body
                %v608 = vld [vmem:[%s606] sm:$0xff]
                %609 = vst [vmem:[%s607] sm:$0xff] %v608
                %v610 = vld [vmem:[%s606 + $0x8] sm:$0xff]
                %611 = vst [vmem:[%s607 + $0x8] sm:$0xff] %v610
                %v612 = vld [vmem:[%s606 + $0x40] sm:$0xff]
                %613 = vst [vmem:[%s607 + $0x10] sm:$0xff] %v612
                %v614 = vld [vmem:[%s606 + $0x48] sm:$0xff]
                %615 = vst [vmem:[%s607 + $0x18] sm:$0xff] %v614
                %v616 = vld [vmem:[%s606 + $0x80] sm:$0xff]
                %617 = vst [vmem:[%s607 + $0x20] sm:$0xff] %v616
                %v618 = vld [vmem:[%s606 + $0x88] sm:$0xff]
                %619 = vst [vmem:[%s607 + $0x28] sm:$0xff] %v618
                %v620 = vld [vmem:[%s606 + $0xc0] sm:$0xff]
                %621 = vst [vmem:[%s607 + $0x30] sm:$0xff] %v620
                %v622 = vld [vmem:[%s606 + $0xc8] sm:$0xff]
                %623 = vst [vmem:[%s607 + $0x38] sm:$0xff] %v622
                %v624 = vld [vmem:[%s606 + $0x100] sm:$0xff]
                %625 = vst [vmem:[%s607 + $0x40] sm:$0xff] %v624
                %v626 = vld [vmem:[%s606 + $0x108] sm:$0xff]
                %627 = vst [vmem:[%s607 + $0x48] sm:$0xff] %v626
                %v628 = vld [vmem:[%s606 + $0x140] sm:$0xff]
                %629 = vst [vmem:[%s607 + $0x50] sm:$0xff] %v628
                %v630 = vld [vmem:[%s606 + $0x148] sm:$0xff]
                %631 = vst [vmem:[%s607 + $0x58] sm:$0xff] %v630
                %v632 = vld [vmem:[%s606 + $0x180] sm:$0xff]
                %633 = vst [vmem:[%s607 + $0x60] sm:$0xff] %v632
                %v634 = vld [vmem:[%s606 + $0x188] sm:$0xff]
                %635 = vst [vmem:[%s607 + $0x68] sm:$0xff] %v634
                %v636 = vld [vmem:[%s606 + $0x1c0] sm:$0xff]
                %637 = vst [vmem:[%s607 + $0x70] sm:$0xff] %v636
                %v638 = vld [vmem:[%s606 + $0x1c8] sm:$0xff]
                %639 = vst [vmem:[%s607 + $0x78] sm:$0xff] %v638
                %v640 = vld [vmem:[%s606 + $0x200] sm:$0xff]
                %641 = vst [vmem:[%s607 + $0x80] sm:$0xff] %v640
                %v642 = vld [vmem:[%s606 + $0x208] sm:$0xff]
                %643 = vst [vmem:[%s607 + $0x88] sm:$0xff] %v642
              $region155: #{downblock.2} parent=149 // loop_footer
                %s605 = sadd.s32 1, %s601
              $region156: #{downblock.2} parent=149 // loop_footer_branch
                %600 = sbr.rel target = $region152
              $region157: #{downblock.2} parent=149 // loop_exit
                _
            $region150: #{downblock.2} parent=141 // pred_fallthru
              _
          $region142: #{downblock.2} parent=137 // pred_fallthru
            _
          %692 = vnop
        $region138: #{downblock.2} parent=19 // pred_fallthru
          _
      $region20: #{downblock.2} parent=5 // pred_fallthru
        _
      %p693 = scmp.le.s32.totalorder 1, %s13
      %p694 = scmp.lt.s32.totalorder %s13, 3
      %p695 = pnand %p693, %p694
      %p696 = pneg %p695
      // Predicated region
      $region173: #{downblock.2} parent=5 // pred_check
        _
      $region174: #{downblock.2} parent=5 // pred_check_branch
        %698 = sbr.rel (%p695) target = $region176
      $region175: #{downblock.2} parent=5 // pred_region
        %s699 = ssub.s32 %s13, 1
        %s700 = sand.u32 %s40, 1
        %s701 = sand.u32 %s40, 1
        %s702 = smul.addr %s701, 144
        %s703 = scalar_lea.vmem [#allocation2], %s702
        // Predicated region
        $region177: #{downblock.2} parent=175 // pred_check
          %p704 = pneg %p53
        $region178: #{downblock.2} parent=175 // pred_check_branch
          %706 = sbr.rel (%p704) target = $region180
        $region179: #{downblock.2} parent=175 // pred_region
          _
        $region180: #{downblock.2} parent=175 // pred_fallthru
          _
        %s707 = sand.u32 %s68, 1
        %s708 = sand.u32 %s68, 1
        %s709 = smul.addr %s708, 144
        %s710 = scalar_lea.vmem [#allocation3], %s709
        // Predicated region
        $region181: #{downblock.2} parent=175 // pred_check
          %p711 = pneg %p81
        $region182: #{downblock.2} parent=175 // pred_check_branch
          %713 = sbr.rel (%p711) target = $region184
        $region183: #{downblock.2} parent=175 // pred_region
          _
        $region184: #{downblock.2} parent=175 // pred_fallthru
          _
        %s714 = sand.u32 %s96, 1
        %s715 = sand.u32 %s96, 1
        %s716 = smul.addr %s715, 144
        %s717 = scalar_lea.vmem [#allocation4], %s716
        // Predicated region
        $region185: #{downblock.2} parent=175 // pred_check
          %p718 = pneg %p109
        $region186: #{downblock.2} parent=175 // pred_check_branch
          %720 = sbr.rel (%p718) target = $region188
        $region187: #{downblock.2} parent=175 // pred_region
          _
        $region188: #{downblock.2} parent=175 // pred_fallthru
          _
        %s721 = sand.u32 %s124, 1
        %s722 = sand.u32 %s124, 1
        %s723 = smul.addr %s722, 144
        %s724 = scalar_lea.vmem [#allocation5], %s723
        // Predicated region
        $region189: #{downblock.2} parent=175 // pred_check
          %p725 = pneg %p137
        $region190: #{downblock.2} parent=175 // pred_check_branch
          %727 = sbr.rel (%p725) target = $region192
        $region191: #{downblock.2} parent=175 // pred_region
          _
        $region192: #{downblock.2} parent=175 // pred_fallthru
          _
        %s728 = sand.u32 %s40, 1
        %s729 = sand.u32 %s40, 1
        %s730 = smul.addr %s729, 144
        %s731 = scalar_lea.vmem [#allocation2], %s730
        %p732 = pneg %p53
        %p733 = pneg %p50
        %s734 = sand.u32 %s68, 1
        %s735 = sand.u32 %s68, 1
        %s736 = smul.addr %s735, 144
        %s737 = scalar_lea.vmem [#allocation3], %s736
        %p738 = pneg %p81
        %p739 = pneg %p78
        %s740 = sand.u32 %s96, 1
        %s741 = sand.u32 %s96, 1
        %s742 = smul.addr %s741, 144
        %s743 = scalar_lea.vmem [#allocation4], %s742
        %p744 = pneg %p109
        %p745 = pneg %p106
        %s746 = sand.u32 %s124, 1
        %s747 = sand.u32 %s124, 1
        %s748 = smul.addr %s747, 144
        %s749 = scalar_lea.vmem [#allocation5], %s748
        %p750 = pneg %p137
        %p751 = pneg %p134
        %p752 = scmp.lt.s32.totalorder %s23, 0
        %s753 = scalar_select %p752, %s23, 0
        %s754 = smul.addr %s753, 8
        %s755 = scalar_lea.vmem %s4, %s754
        %p756 = pneg %p163
        %p757 = pneg %p160
        %p758 = pneg %p191
        %p759 = pneg %p188
        %p760 = scmp.lt.s32.totalorder %s22, 1
        %s761 = scalar_select %p760, %s22, 1
        %p762 = scmp.lt.s32.totalorder %s23, 0
        %s763 = scalar_select %p762, %s23, 0
        %s764 = smul.addr %s761, 8
        %s765 = sadd.s32 %s763, %s764
        %s766 = smul.addr %s765, 8
        %s767 = scalar_lea.vmem %s5, %s766
        %p768 = pneg %p219
        %p769 = pneg %p216
        %p770 = scmp.lt.s32.totalorder %s22, 1
        %s771 = scalar_select %p770, %s22, 1
        %p772 = scmp.lt.s32.totalorder %s23, 0
        %s773 = scalar_select %p772, %s23, 0
        %s774 = sadd.s32 %s773, %s771
        %s775 = smul.addr %s774, 2
        %s776 = scalar_lea.vmem %s6, %s775
        %p777 = scmp.lt.s32.totalorder %s23, 0
        %s778 = scalar_select %p777, %s23, 0
        %s779 = smul.addr %s778, 8
        %s780 = scalar_lea.vmem %s4, %s779
        %p781 = scmp.lt.s32.totalorder %s22, 1
        %s782 = scalar_select %p781, %s22, 1
        %p783 = scmp.lt.s32.totalorder %s23, 0
        %s784 = scalar_select %p783, %s23, 0
        %s785 = smul.addr %s782, 8
        %s786 = sadd.s32 %s784, %s785
        %s787 = smul.addr %s786, 8
        %s788 = scalar_lea.vmem %s5, %s787
        %p789 = scmp.lt.s32.totalorder %s22, 1
        %s790 = scalar_select %p789, %s22, 1
        %p791 = scmp.lt.s32.totalorder %s23, 0
        %s792 = scalar_select %p791, %s23, 0
        %s793 = sadd.s32 %s792, %s790
        %s794 = smul.addr %s793, 2
        %s795 = scalar_lea.vmem %s6, %s794
        %v796 = vld [vmem:[%s703] sm:$0xff]
        %v797 = vld [vmem:[%s703 + $0x10] sm:$0xff]
        %v798 = vld [vmem:[%s703 + $0x20] sm:$0xff]
        %v799 = vld [vmem:[%s703 + $0x30] sm:$0xff]
        %v800 = vld [vmem:[%s703 + $0x40] sm:$0xff]
        %v801 = vld [vmem:[%s703 + $0x50] sm:$0xff]
        %v802 = vld [vmem:[%s703 + $0x60] sm:$0xff]
        %v803 = vld [vmem:[%s703 + $0x70] sm:$0xff]
        %v804 = vld [vmem:[%s780] sm:$0x1]
        %v805 = vlaneseq
        %v806 = vshrl.u32 %v805, 7
        %v807 = vsub.s32 0, %v806
        %v808 = vrot.slane %v804, %v807
        %v809 = vmul.f32 %v808, %v796
        %v810 = vmul.f32 %v808, %v797
        %v811 = vmul.f32 %v808, %v798
        %v812 = vmul.f32 %v808, %v799
        %v813 = vmul.f32 %v808, %v800
        %v814 = vmul.f32 %v808, %v801
        %v815 = vmul.f32 %v808, %v802
        %v816 = vmul.f32 %v808, %v803
        %v817 = vadd.f32 %v809, 0.0
        %v818 = vadd.f32 %v810, 0.0
        %v819 = vadd.f32 %v811, 0.0
        %v820 = vadd.f32 %v812, 0.0
        %v821 = vadd.f32 %v813, 0.0
        %v822 = vadd.f32 %v814, 0.0
        %v823 = vadd.f32 %v815, 0.0
        %v824 = vadd.f32 %v816, 0.0
        %v825 = vld [vmem:[%s710] sm:$0xff]
        %v826 = vld [vmem:[%s710 + $0x10] sm:$0xff]
        %v827 = vld [vmem:[%s710 + $0x20] sm:$0xff]
        %v828 = vld [vmem:[%s710 + $0x30] sm:$0xff]
        %v829 = vld [vmem:[%s710 + $0x40] sm:$0xff]
        %v830 = vld [vmem:[%s710 + $0x50] sm:$0xff]
        %v831 = vld [vmem:[%s710 + $0x60] sm:$0xff]
        %v832 = vld [vmem:[%s710 + $0x70] sm:$0xff]
        %v833 = vld [vmem:[%s780 + $0x1] sm:$0x1]
        %v834 = vlaneseq
        %v835 = vshrl.u32 %v834, 7
        %v836 = vsub.s32 0, %v835
        %v837 = vrot.slane %v833, %v836
        %v838 = vmul.f32 %v837, %v825
        %v839 = vmul.f32 %v837, %v826
        %v840 = vmul.f32 %v837, %v827
        %v841 = vmul.f32 %v837, %v828
        %v842 = vmul.f32 %v837, %v829
        %v843 = vmul.f32 %v837, %v830
        %v844 = vmul.f32 %v837, %v831
        %v845 = vmul.f32 %v837, %v832
        %v846 = vadd.f32 %v817, %v838
        %v847 = vadd.f32 %v818, %v839
        %v848 = vadd.f32 %v819, %v840
        %v849 = vadd.f32 %v820, %v841
        %v850 = vadd.f32 %v821, %v842
        %v851 = vadd.f32 %v822, %v843
        %v852 = vadd.f32 %v823, %v844
        %v853 = vadd.f32 %v824, %v845
        %v854 = vld [vmem:[%s703 + $0x1] sm:$0xff]
        %v855 = vld [vmem:[%s703 + $0x11] sm:$0xff]
        %v856 = vld [vmem:[%s703 + $0x21] sm:$0xff]
        %v857 = vld [vmem:[%s703 + $0x31] sm:$0xff]
        %v858 = vld [vmem:[%s703 + $0x41] sm:$0xff]
        %v859 = vld [vmem:[%s703 + $0x51] sm:$0xff]
        %v860 = vld [vmem:[%s703 + $0x61] sm:$0xff]
        %v861 = vld [vmem:[%s703 + $0x71] sm:$0xff]
        %v862 = vld [vmem:[%s780 + $0x2] sm:$0x1]
        %v863 = vlaneseq
        %v864 = vshrl.u32 %v863, 7
        %v865 = vsub.s32 0, %v864
        %v866 = vrot.slane %v862, %v865
        %v867 = vmul.f32 %v866, %v854
        %v868 = vmul.f32 %v866, %v855
        %v869 = vmul.f32 %v866, %v856
        %v870 = vmul.f32 %v866, %v857
        %v871 = vmul.f32 %v866, %v858
        %v872 = vmul.f32 %v866, %v859
        %v873 = vmul.f32 %v866, %v860
        %v874 = vmul.f32 %v866, %v861
        %v875 = vadd.f32 %v846, %v867
        %v876 = vadd.f32 %v847, %v868
        %v877 = vadd.f32 %v848, %v869
        %v878 = vadd.f32 %v849, %v870
        %v879 = vadd.f32 %v850, %v871
        %v880 = vadd.f32 %v851, %v872
        %v881 = vadd.f32 %v852, %v873
        %v882 = vadd.f32 %v853, %v874
        %v883 = vld [vmem:[%s717] sm:$0xff]
        %v884 = vld [vmem:[%s717 + $0x10] sm:$0xff]
        %v885 = vld [vmem:[%s717 + $0x20] sm:$0xff]
        %v886 = vld [vmem:[%s717 + $0x30] sm:$0xff]
        %v887 = vld [vmem:[%s717 + $0x40] sm:$0xff]
        %v888 = vld [vmem:[%s717 + $0x50] sm:$0xff]
        %v889 = vld [vmem:[%s717 + $0x60] sm:$0xff]
        %v890 = vld [vmem:[%s717 + $0x70] sm:$0xff]
        %v891 = vld [vmem:[%s780 + $0x3] sm:$0x1]
        %v892 = vlaneseq
        %v893 = vshrl.u32 %v892, 7
        %v894 = vsub.s32 0, %v893
        %v895 = vrot.slane %v891, %v894
        %v896 = vmul.f32 %v895, %v883
        %v897 = vmul.f32 %v895, %v884
        %v898 = vmul.f32 %v895, %v885
        %v899 = vmul.f32 %v895, %v886
        %v900 = vmul.f32 %v895, %v887
        %v901 = vmul.f32 %v895, %v888
        %v902 = vmul.f32 %v895, %v889
        %v903 = vmul.f32 %v895, %v890
        %v904 = vadd.f32 %v875, %v896
        %v905 = vadd.f32 %v876, %v897
        %v906 = vadd.f32 %v877, %v898
        %v907 = vadd.f32 %v878, %v899
        %v908 = vadd.f32 %v879, %v900
        %v909 = vadd.f32 %v880, %v901
        %v910 = vadd.f32 %v881, %v902
        %v911 = vadd.f32 %v882, %v903
        %v912 = vld [vmem:[%s724] sm:$0xff]
        %v913 = vld [vmem:[%s724 + $0x10] sm:$0xff]
        %v914 = vld [vmem:[%s724 + $0x20] sm:$0xff]
        %v915 = vld [vmem:[%s724 + $0x30] sm:$0xff]
        %v916 = vld [vmem:[%s724 + $0x40] sm:$0xff]
        %v917 = vld [vmem:[%s724 + $0x50] sm:$0xff]
        %v918 = vld [vmem:[%s724 + $0x60] sm:$0xff]
        %v919 = vld [vmem:[%s724 + $0x70] sm:$0xff]
        %v920 = vld [vmem:[%s780 + $0x4] sm:$0x1]
        %v921 = vlaneseq
        %v922 = vshrl.u32 %v921, 7
        %v923 = vsub.s32 0, %v922
        %v924 = vrot.slane %v920, %v923
        %v925 = vmul.f32 %v924, %v912
        %v926 = vmul.f32 %v924, %v913
        %v927 = vmul.f32 %v924, %v914
        %v928 = vmul.f32 %v924, %v915
        %v929 = vmul.f32 %v924, %v916
        %v930 = vmul.f32 %v924, %v917
        %v931 = vmul.f32 %v924, %v918
        %v932 = vmul.f32 %v924, %v919
        %v933 = vadd.f32 %v904, %v925
        %v934 = vadd.f32 %v905, %v926
        %v935 = vadd.f32 %v906, %v927
        %v936 = vadd.f32 %v907, %v928
        %v937 = vadd.f32 %v908, %v929
        %v938 = vadd.f32 %v909, %v930
        %v939 = vadd.f32 %v910, %v931
        %v940 = vadd.f32 %v911, %v932
        %v941 = vld [vmem:[%s717 + $0x1] sm:$0xff]
        %v942 = vld [vmem:[%s717 + $0x11] sm:$0xff]
        %v943 = vld [vmem:[%s717 + $0x21] sm:$0xff]
        %v944 = vld [vmem:[%s717 + $0x31] sm:$0xff]
        %v945 = vld [vmem:[%s717 + $0x41] sm:$0xff]
        %v946 = vld [vmem:[%s717 + $0x51] sm:$0xff]
        %v947 = vld [vmem:[%s717 + $0x61] sm:$0xff]
        %v948 = vld [vmem:[%s717 + $0x71] sm:$0xff]
        %v949 = vld [vmem:[%s780 + $0x5] sm:$0x1]
        %v950 = vlaneseq
        %v951 = vshrl.u32 %v950, 7
        %v952 = vsub.s32 0, %v951
        %v953 = vrot.slane %v949, %v952
        %v954 = vmul.f32 %v953, %v941
        %v955 = vmul.f32 %v953, %v942
        %v956 = vmul.f32 %v953, %v943
        %v957 = vmul.f32 %v953, %v944
        %v958 = vmul.f32 %v953, %v945
        %v959 = vmul.f32 %v953, %v946
        %v960 = vmul.f32 %v953, %v947
        %v961 = vmul.f32 %v953, %v948
        %v962 = vadd.f32 %v933, %v954
        %v963 = vadd.f32 %v934, %v955
        %v964 = vadd.f32 %v935, %v956
        %v965 = vadd.f32 %v936, %v957
        %v966 = vadd.f32 %v937, %v958
        %v967 = vadd.f32 %v938, %v959
        %v968 = vadd.f32 %v939, %v960
        %v969 = vadd.f32 %v940, %v961
        %s970 = scalar_lea.vmem %s703, 16 [#allocation2]
        %v971 = vld [vmem:[%s970] sm:$0xff]
        %v972 = vld [vmem:[%s970 + $0x10] sm:$0xff]
        %v973 = vld [vmem:[%s970 + $0x20] sm:$0xff]
        %v974 = vld [vmem:[%s970 + $0x30] sm:$0xff]
        %v975 = vld [vmem:[%s970 + $0x40] sm:$0xff]
        %v976 = vld [vmem:[%s970 + $0x50] sm:$0xff]
        %v977 = vld [vmem:[%s970 + $0x60] sm:$0xff]
        %v978 = vld [vmem:[%s970 + $0x70] sm:$0xff]
        %v979 = vld [vmem:[%s780 + $0x6] sm:$0x1]
        %v980 = vlaneseq
        %v981 = vshrl.u32 %v980, 7
        %v982 = vsub.s32 0, %v981
        %v983 = vrot.slane %v979, %v982
        %v984 = vmul.f32 %v983, %v971
        %v985 = vmul.f32 %v983, %v972
        %v986 = vmul.f32 %v983, %v973
        %v987 = vmul.f32 %v983, %v974
        %v988 = vmul.f32 %v983, %v975
        %v989 = vmul.f32 %v983, %v976
        %v990 = vmul.f32 %v983, %v977
        %v991 = vmul.f32 %v983, %v978
        %v992 = vadd.f32 %v962, %v984
        %v993 = vadd.f32 %v963, %v985
        %v994 = vadd.f32 %v964, %v986
        %v995 = vadd.f32 %v965, %v987
        %v996 = vadd.f32 %v966, %v988
        %v997 = vadd.f32 %v967, %v989
        %v998 = vadd.f32 %v968, %v990
        %v999 = vadd.f32 %v969, %v991
        %s1000 = scalar_lea.vmem %s710, 16 [#allocation3]
        %v1001 = vld [vmem:[%s1000] sm:$0xff]
        %v1002 = vld [vmem:[%s1000 + $0x10] sm:$0xff]
        %v1003 = vld [vmem:[%s1000 + $0x20] sm:$0xff]
        %v1004 = vld [vmem:[%s1000 + $0x30] sm:$0xff]
        %v1005 = vld [vmem:[%s1000 + $0x40] sm:$0xff]
        %v1006 = vld [vmem:[%s1000 + $0x50] sm:$0xff]
        %v1007 = vld [vmem:[%s1000 + $0x60] sm:$0xff]
        %v1008 = vld [vmem:[%s1000 + $0x70] sm:$0xff]
        %v1009 = vld [vmem:[%s780 + $0x7] sm:$0x1]
        %v1010 = vlaneseq
        %v1011 = vshrl.u32 %v1010, 7
        %v1012 = vsub.s32 0, %v1011
        %v1013 = vrot.slane %v1009, %v1012
        %v1014 = vmul.f32 %v1013, %v1001
        %v1015 = vmul.f32 %v1013, %v1002
        %v1016 = vmul.f32 %v1013, %v1003
        %v1017 = vmul.f32 %v1013, %v1004
        %v1018 = vmul.f32 %v1013, %v1005
        %v1019 = vmul.f32 %v1013, %v1006
        %v1020 = vmul.f32 %v1013, %v1007
        %v1021 = vmul.f32 %v1013, %v1008
        %v1022 = vadd.f32 %v992, %v1014
        %v1023 = vadd.f32 %v993, %v1015
        %v1024 = vadd.f32 %v994, %v1016
        %v1025 = vadd.f32 %v995, %v1017
        %v1026 = vadd.f32 %v996, %v1018
        %v1027 = vadd.f32 %v997, %v1019
        %v1028 = vadd.f32 %v998, %v1020
        %v1029 = vadd.f32 %v999, %v1021
        %v1030 = vld [vmem:[%s970 + $0x1] sm:$0xff]
        %v1031 = vld [vmem:[%s970 + $0x11] sm:$0xff]
        %v1032 = vld [vmem:[%s970 + $0x21] sm:$0xff]
        %v1033 = vld [vmem:[%s970 + $0x31] sm:$0xff]
        %v1034 = vld [vmem:[%s970 + $0x41] sm:$0xff]
        %v1035 = vld [vmem:[%s970 + $0x51] sm:$0xff]
        %v1036 = vld [vmem:[%s970 + $0x61] sm:$0xff]
        %v1037 = vld [vmem:[%s970 + $0x71] sm:$0xff]
        %v1038 = vld [vmem:[%s780 + $0x8] sm:$0x1]
        %v1039 = vlaneseq
        %v1040 = vshrl.u32 %v1039, 7
        %v1041 = vsub.s32 0, %v1040
        %v1042 = vrot.slane %v1038, %v1041
        %v1043 = vmul.f32 %v1042, %v1030
        %v1044 = vmul.f32 %v1042, %v1031
        %v1045 = vmul.f32 %v1042, %v1032
        %v1046 = vmul.f32 %v1042, %v1033
        %v1047 = vmul.f32 %v1042, %v1034
        %v1048 = vmul.f32 %v1042, %v1035
        %v1049 = vmul.f32 %v1042, %v1036
        %v1050 = vmul.f32 %v1042, %v1037
        %v1051 = vadd.f32 %v1022, %v1043
        %v1052 = vadd.f32 %v1023, %v1044
        %v1053 = vadd.f32 %v1024, %v1045
        %v1054 = vadd.f32 %v1025, %v1046
        %v1055 = vadd.f32 %v1026, %v1047
        %v1056 = vadd.f32 %v1027, %v1048
        %v1057 = vadd.f32 %v1028, %v1049
        %v1058 = vadd.f32 %v1029, %v1050
        %vm1059 = vcmask 31744
        %1060 = vst.msk [vmem:[%s788] sm:$0xff] %vm1059, %v1051
        %1061 = vst.msk [vmem:[%s788 + $0x8] sm:$0xff] %vm1059, %v1052
        %1062 = vst.msk [vmem:[%s788 + $0x10] sm:$0xff] %vm1059, %v1053
        %1063 = vst.msk [vmem:[%s788 + $0x18] sm:$0xff] %vm1059, %v1054
        %1064 = vst.msk [vmem:[%s788 + $0x20] sm:$0xff] %vm1059, %v1055
        %1065 = vst.msk [vmem:[%s788 + $0x28] sm:$0xff] %vm1059, %v1056
        %1066 = vst.msk [vmem:[%s788 + $0x30] sm:$0xff] %vm1059, %v1057
        %1067 = vst.msk [vmem:[%s788 + $0x38] sm:$0xff] %vm1059, %v1058
        %v1068 = vsel %vm1059, %v1051, 0.0
        %v1069 = vsel %vm1059, %v1052, 0.0
        %v1070 = vadd.f32 %v1068, %v1069
        %v1071 = vsel %vm1059, %v1053, 0.0
        %v1072 = vadd.f32 %v1070, %v1071
        %v1073 = vsel %vm1059, %v1054, 0.0
        %v1074 = vadd.f32 %v1072, %v1073
        %v1075 = vsel %vm1059, %v1055, 0.0
        %v1076 = vadd.f32 %v1074, %v1075
        %v1077 = vsel %vm1059, %v1056, 0.0
        %v1078 = vadd.f32 %v1076, %v1077
        %v1079 = vsel %vm1059, %v1057, 0.0
        %v1080 = vadd.f32 %v1078, %v1079
        %v1081 = vsel %vm1059, %v1058, 0.0
        %v1082 = vadd.f32 %v1080, %v1081
        %v1083 = vsel %vm1059, %v1082, 0.0
        %v1084 = vrot.slane %v1083, 4
        %v1085 = vadd.f32 %v1083, %v1084
        %v1086 = vrot.slane %v1085, 2
        %v1087 = vadd.f32 %v1085, %v1086
        %v1088 = vrot.slane %v1087, 1
        %v1089 = vadd.f32 %v1087, %v1088
        %v1090 = vmul.f32 %v1051, %v1051
        %v1091 = vmul.f32 %v1052, %v1052
        %v1092 = vmul.f32 %v1053, %v1053
        %v1093 = vmul.f32 %v1054, %v1054
        %v1094 = vmul.f32 %v1055, %v1055
        %v1095 = vmul.f32 %v1056, %v1056
        %v1096 = vmul.f32 %v1057, %v1057
        %v1097 = vmul.f32 %v1058, %v1058
        %v1098 = vsel %vm1059, %v1090, 0.0
        %v1099 = vsel %vm1059, %v1091, 0.0
        %v1100 = vadd.f32 %v1098, %v1099
        %v1101 = vsel %vm1059, %v1092, 0.0
        %v1102 = vadd.f32 %v1100, %v1101
        %v1103 = vsel %vm1059, %v1093, 0.0
        %v1104 = vadd.f32 %v1102, %v1103
        %v1105 = vsel %vm1059, %v1094, 0.0
        %v1106 = vadd.f32 %v1104, %v1105
        %v1107 = vsel %vm1059, %v1095, 0.0
        %v1108 = vadd.f32 %v1106, %v1107
        %v1109 = vsel %vm1059, %v1096, 0.0
        %v1110 = vadd.f32 %v1108, %v1109
        %v1111 = vsel %vm1059, %v1097, 0.0
        %v1112 = vadd.f32 %v1110, %v1111
        %v1113 = vsel %vm1059, %v1112, 0.0
        %v1114 = vrot.slane %v1113, 4
        %v1115 = vadd.f32 %v1113, %v1114
        %v1116 = vrot.slane %v1115, 2
        %v1117 = vadd.f32 %v1115, %v1116
        %v1118 = vrot.slane %v1117, 1
        %v1119 = vadd.f32 %v1117, %v1118
        %vm1120 = vcmask 24576
        %1121 = vst.msk [vmem:[%s795] sm:$0x1] %vm1120, %v1089
        %1122 = vst.msk [vmem:[%s795 + $0x1] sm:$0x1] %vm1120, %v1119
        %p1123 = scmp.lt.s32.totalorder %s22, 1
        %s1124 = scalar_select %p1123, %s22, 1
        %p1125 = scmp.lt.s32.totalorder %s23, 0
        %s1126 = scalar_select %p1125, %s23, 0
        %s1127 = smul.addr %s1124, 8
        %s1128 = sadd.s32 %s1126, %s1127
        %s1129 = smul.addr %s1128, 8
        %s1130 = scalar_lea.vmem %s5, %s1129
        %p1131 = scmp.lt.s32.totalorder %s22, 1
        %s1132 = scalar_select %p1131, %s22, 1
        %p1133 = scmp.lt.s32.totalorder %s23, 0
        %s1134 = scalar_select %p1133, %s23, 0
        %s1135 = sadd.s32 %s1134, %s1132
        %s1136 = smul.addr %s1135, 2
        %s1137 = scalar_lea.vmem %s6, %s1136
        // Predicated region
        $region193: #{downblock.2} parent=175 // pred_check
          %p1138 = pneg %p188
        $region194: #{downblock.2} parent=175 // pred_check_branch
          %1140 = sbr.rel (%p1138) target = $region196
        $region195: #{downblock.2} parent=175 // pred_region
          _
        $region196: #{downblock.2} parent=175 // pred_fallthru
          _
        // Predicated region
        $region197: #{downblock.2} parent=175 // pred_check
          %p1141 = pneg %p216
        $region198: #{downblock.2} parent=175 // pred_check_branch
          %1143 = sbr.rel (%p1141) target = $region200
        $region199: #{downblock.2} parent=175 // pred_region
          _
        $region200: #{downblock.2} parent=175 // pred_fallthru
          _
      $region176: #{downblock.2} parent=5 // pred_fallthru
        _
      %p1144 = scmp.le.s32.totalorder 2, %s13
      // Predicated region
      $region201: #{downblock.2} parent=5 // pred_check
        %p1145 = pneg %p1144
      $region202: #{downblock.2} parent=5 // pred_check_branch
        %1147 = sbr.rel (%p1145) target = $region204
      $region203: #{downblock.2} parent=5 // pred_region
        %s1148 = ssub.s32 %s13, 2
        // Predicated region
        $region205: #{downblock.2} parent=203 // pred_check
          %p1149 = pneg %p194
        $region206: #{downblock.2} parent=203 // pred_check_branch
          %1151 = sbr.rel (%p1149) target = $region208
        $region207: #{downblock.2} parent=203 // pred_region
          %p1152 = scmp.lt.s32.totalorder %s24, 1
          %s1153 = scalar_select %p1152, %s24, 1
          %p1154 = scmp.lt.s32.totalorder %s25, 0
          %s1155 = scalar_select %p1154, %s25, 0
          %s1156 = smul.addr %s1153, 8
          %s1157 = sadd.s32 %s1155, %s1156
          %s1158 = smul.addr %s1157, 8
          %s1159 = scalar_lea.vmem %s5, %s1158
        $region208: #{downblock.2} parent=203 // pred_fallthru
          _
        // Predicated region
        $region209: #{downblock.2} parent=203 // pred_check
          %p1160 = pneg %p222
        $region210: #{downblock.2} parent=203 // pred_check_branch
          %1162 = sbr.rel (%p1160) target = $region212
        $region211: #{downblock.2} parent=203 // pred_region
          %p1163 = scmp.lt.s32.totalorder %s24, 1
          %s1164 = scalar_select %p1163, %s24, 1
          %p1165 = scmp.lt.s32.totalorder %s25, 0
          %s1166 = scalar_select %p1165, %s25, 0
          %s1167 = sadd.s32 %s1166, %s1164
          %s1168 = smul.addr %s1167, 2
          %s1169 = scalar_lea.vmem %s6, %s1168
        $region212: #{downblock.2} parent=203 // pred_fallthru
          _
      $region204: #{downblock.2} parent=5 // pred_fallthru
        _
    $region6: #{downblock.2} parent=1 // loop_footer
      %s17 = sadd.s32 1, %s13
    $region7: #{downblock.2} parent=1 // loop_footer_branch
      %12 = sbr.rel target = $region3
    $region8: #{downblock.2} parent=1 // loop_exit
      _

</llo_original>
